<compile_context>
chip_gen: v5e
topology: v5e:2x2
jax: 0.10.0
libtpu: 0.0.40
codegen_flags: <defaults>
</compile_context>

<pallas_src>
import functools

import jax
import jax.numpy as jnp
import numpy as np
from jax.experimental import pallas as pl
from jax.experimental.pallas import tpu as pltpu


def _round_up(x, m):
    return (x + m - 1) // m * m


def _decoder_step_kernel(emb_ref, tilde_ref, h0_ref, c0_ref, w_ref, b_ref,
                         h_out_ref, c_out_ref, *,
                         word_vec_size, hidden_size, n_layers):
    """Fused single-time-step multi-layer LSTM.

    emb_ref   : (B, W)           layer-0 embedding input
    tilde_ref : (B, H)           layer-0 attention feedback (h_t_1_tilde)
    h0_ref    : (L, B, H)        previous hidden states
    c0_ref    : (L, B, H)        previous cell states
    w_ref     : (L, Kpad, 4H)    stacked [W_ih^T ; W_hh^T ; 0] per layer
    b_ref     : (L, 1, 4H)       folded b_ih + b_hh per layer
    h_out_ref : (B, L*H)         new hidden states, layer-major along lanes
    c_out_ref : (B, L*H)         new cell states, layer-major along lanes
    """
    W, H, L = word_vec_size, hidden_size, n_layers
    B = emb_ref.shape[0]
    Kpad = w_ref.shape[1]
    prec = jax.lax.Precision.HIGHEST

    # Hoisted once: lane mask selecting the 'g' gate block [2H, 3H) of the
    # (B, 4H) gates vreg (tanh there, sigmoid elsewhere). Keeps EUP/VPU work
    # on full 128-lane vregs instead of four 32-lane slices.
    lane = jax.lax.broadcasted_iota(jnp.int32, (B, 4 * H), 1)
    is_g = jnp.logical_and(lane >= 2 * H, lane < 3 * H)

    def cell(x, layer):
        # One fused MXU matmul: (B, Kpad) @ (Kpad, 4H) -> (B, 4H)
        gates = jnp.dot(x, w_ref[layer],
                        preferred_element_type=jnp.float32,
                        precision=prec) + b_ref[layer]
        act = jnp.where(is_g, jnp.tanh(gates), jax.nn.sigmoid(gates))
        i_g = act[:, 0 * H:1 * H]
        f_g = act[:, 1 * H:2 * H]
        g_g = act[:, 2 * H:3 * H]
        o_g = act[:, 3 * H:4 * H]
        c_new = f_g * c0_ref[layer] + i_g * g_g
        h_new = o_g * jnp.tanh(c_new)
        return h_new, c_new

    h_parts = []
    c_parts = []

    # ---- Layer 0: operand = [emb (W) | tilde (H) | h0[0] (H) | zero pad] ----
    pad0 = Kpad - (W + 2 * H)
    x_parts = [emb_ref[...], tilde_ref[...], h0_ref[0]]
    if pad0 > 0:
        x_parts.append(jnp.zeros((B, pad0), jnp.float32))
    x = jnp.concatenate(x_parts, axis=-1)
    h_new, c_new = cell(x, 0)
    h_parts.append(h_new)
    c_parts.append(c_new)

    # ---- Layers 1..L-1: operand = [h_{l-1} (H) | h0[l] (H) | pad] ----------
    # Padding columns multiply zero weight rows, so their contents are inert.
    padk = Kpad - 2 * H
    zpad = jnp.zeros((B, padk), jnp.float32) if padk > 0 else None
    for layer in range(1, L):
        xk = [h_new, h0_ref[layer]]
        if zpad is not None:
            xk.append(zpad)
        x = jnp.concatenate(xk, axis=-1)
        h_new, c_new = cell(x, layer)
        h_parts.append(h_new)
        c_parts.append(c_new)

    # Single lane-dense (B, L*H) = (8, 128) unmasked store per output tensor.
    h_out_ref[...] = jnp.concatenate(h_parts, axis=-1)
    c_out_ref[...] = jnp.concatenate(c_parts, axis=-1)


def init_decoder_params(key, word_vec_size, hidden_size, n_layers):
    """Init matching nn.LSTM parameter shapes, pre-packed for the fused kernel.

    PyTorch stores weight_ih_l{k}: (4H, in), weight_hh_l{k}: (4H, H),
    bias_ih/bias_hh: (4H,), gate order [i, f, g, o].  We stack
    [W_ih^T ; W_hh^T] into a single (Kpad, 4H) matrix per layer (zero-padded to
    a common Kpad, rounded up to a multiple of 128 lanes) and fold the two
    biases into one (1, 4H) row.

    Returns (kernel_params, raw_params):
      kernel_params = (w_stacked (L, Kpad, 4H), b_stacked (L, 1, 4H))
      raw_params    = list of (w_ih, w_hh, b_ih, b_hh) for reference checking.
    """
    W, H, L = word_vec_size, hidden_size, n_layers
    Kpad = _round_up(W + 2 * H, 128)
    k = 1.0 / float(np.sqrt(H))
    w_layers, b_layers, raw = [], [], []
    for layer in range(L):
        in_size = (W + H) if layer == 0 else H
        key, k1, k2, k3, k4 = jax.random.split(key, 5)
        w_ih = jax.random.uniform(k1, (4 * H, in_size), jnp.float32, -k, k)
        w_hh = jax.random.uniform(k2, (4 * H, H), jnp.float32, -k, k)
        b_ih = jax.random.uniform(k3, (4 * H,), jnp.float32, -k, k)
        b_hh = jax.random.uniform(k4, (4 * H,), jnp.float32, -k, k)
        raw.append((w_ih, w_hh, b_ih, b_hh))
        w_cat = jnp.concatenate([w_ih.T, w_hh.T], axis=0)     # (in+H, 4H)
        w_cat = jnp.pad(w_cat, ((0, Kpad - w_cat.shape[0]), (0, 0)))
        w_layers.append(w_cat)
        b_layers.append((b_ih + b_hh).reshape(1, 4 * H))
    return (jnp.stack(w_layers, 0), jnp.stack(b_layers, 0)), raw


@functools.partial(jax.jit, static_argnames=("hidden_size",))
def decoder_forward(params, emb_t, h_t_1_tilde, h_t_1, *, hidden_size):
    """Mirrors Decoder.forward (single decode step, eval mode).

    emb_t:        (B, 1, word_vec_size)
    h_t_1_tilde:  (B, 1, hidden_size) or None
    h_t_1:        tuple (h_0, c_0), each (n_layers, B, hidden_size)
    returns       y: (B, 1, H), (h_n, c_n): each (n_layers, B, H)
    """
    w_stacked, b_stacked = params
    h_0, c_0 = h_t_1
    L, B, H = h_0.shape
    W = emb_t.shape[-1]
    if h_t_1_tilde is None:
        h_t_1_tilde = jnp.zeros((B, 1, hidden_size), dtype=emb_t.dtype)

    emb2d = emb_t[:, 0, :]            # (B, W)
    tilde2d = h_t_1_tilde[:, 0, :]    # (B, H)

    vmem = pl.BlockSpec(memory_space=pltpu.MemorySpace.VMEM)
    kernel = functools.partial(_decoder_step_kernel,
                               word_vec_size=W, hidden_size=H, n_layers=L)
    h_slab, c_slab = pl.pallas_call(
        kernel,
        out_shape=(jax.ShapeDtypeStruct((B, L * H), jnp.float32),
                   jax.ShapeDtypeStruct((B, L * H), jnp.float32)),
        in_specs=[vmem] * 6,
        out_specs=(vmem, vmem),
    )(emb2d, tilde2d, h_0, c_0, w_stacked, b_stacked)

    y = h_slab[:, (L - 1) * H:][:, None, :]                 # (B, 1, H)
    h_n = h_slab.reshape(B, L, H).transpose(1, 0, 2)        # (L, B, H)
    c_n = c_slab.reshape(B, L, H).transpose(1, 0, 2)        # (L, B, H)
    return y, (h_n, c_n)


def _reference_forward(raw_params, emb_t, h_t_1_tilde, h_t_1, hidden_size):
    """Pure-JAX reference of the PyTorch Decoder forward (eval mode)."""
    h_0, c_0 = h_t_1
    B = emb_t.shape[0]
    H = hidden_size
    prec = jax.lax.Precision.HIGHEST
    if h_t_1_tilde is None:
        h_t_1_tilde = jnp.zeros((B, 1, H), dtype=emb_t.dtype)
    x = jnp.concatenate([emb_t, h_t_1_tilde], axis=-1)[:, 0, :]
    hs, cs = [], []
    inp = x
    for layer, (w_ih, w_hh, b_ih, b_hh) in enumerate(raw_params):
        gates = (jnp.dot(inp, w_ih.T, precision=prec)
                 + jnp.dot(h_0[layer], w_hh.T, precision=prec)
                 + b_ih + b_hh)
        i = jax.nn.sigmoid(gates[:, 0 * H:1 * H])
        f = jax.nn.sigmoid(gates[:, 1 * H:2 * H])
        g = jnp.tanh(gates[:, 2 * H:3 * H])
        o = jax.nn.sigmoid(gates[:, 3 * H:4 * H])
        c = f * c_0[layer] + i * g
        h = o * jnp.tanh(c)
        hs.append(h)
        cs.append(c)
        inp = h
    return hs[-1][:, None, :], (jnp.stack(hs, 0), jnp.stack(cs, 0))


if __name__ == "__main__":
    word_vec_size = 32
    hidden_size = 32
    n_layers = 4
    batch = 8

    key = jax.random.PRNGKey(0)
    key, kp, k1, k2, k3, k4 = jax.random.split(key, 6)

    params, raw_params = init_decoder_params(kp, word_vec_size, hidden_size,
                                             n_layers)

    emb_t = jax.random.normal(k1, (batch, 1, word_vec_size), jnp.float32)
    h_t_1_tilde = jax.random.normal(k2, (batch, 1, hidden_size), jnp.float32)
    h_0 = jax.random.normal(k3, (n_layers, batch, hidden_size), jnp.float32)
    c_0 = jax.random.normal(k4, (n_layers, batch, hidden_size), jnp.float32)

    y, (h_n, c_n) = decoder_forward(params, emb_t, h_t_1_tilde, (h_0, c_0),
                                    hidden_size=hidden_size)
    jax.block_until_ready((y, h_n, c_n))

    assert y.shape == (batch, 1, hidden_size)
    assert h_n.shape == (n_layers, batch, hidden_size)
    assert c_n.shape == (n_layers, batch, hidden_size)

    # Numerical check against a pure-JAX reference of the PyTorch forward.
    y_r, (h_r, c_r) = _reference_forward(raw_params, emb_t, h_t_1_tilde,
                                         (h_0, c_0), hidden_size)
    np.testing.assert_allclose(np.asarray(y), np.asarray(y_r),
                               rtol=1e-4, atol=1e-4)
    np.testing.assert_allclose(np.asarray(h_n), np.asarray(h_r),
                               rtol=1e-4, atol=1e-4)
    np.testing.assert_allclose(np.asarray(c_n), np.asarray(c_r),
                               rtol=1e-4, atol=1e-4)

    # Also exercise the h_t_1_tilde=None branch (zero-filled tilde).
    y0, _ = decoder_forward(params, emb_t, None, (h_0, c_0),
                            hidden_size=hidden_size)
    jax.block_until_ready(y0)
    y0_r, _ = _reference_forward(raw_params, emb_t, None, (h_0, c_0),
                                 hidden_size)
    np.testing.assert_allclose(np.asarray(y0), np.asarray(y0_r),
                               rtol=1e-4, atol=1e-4)

    print("KERNEL_OK")
</pallas_src>

<mosaic_0001>
module attributes {stable_mosaic.version = 11 : i64} {
  func.func @_decoder_step_kernel(%arg0: memref<8x32xf32, #tpu.memory_space<vmem>>, %arg1: memref<8x32xf32, #tpu.memory_space<vmem>>, %arg2: memref<4x8x32xf32, #tpu.memory_space<vmem>>, %arg3: memref<4x8x32xf32, #tpu.memory_space<vmem>>, %arg4: memref<4x128x128xf32, #tpu.memory_space<vmem>>, %arg5: memref<4x1x128xf32, #tpu.memory_space<vmem>>, %arg6: memref<8x128xf32, #tpu.memory_space<vmem>>, %arg7: memref<8x128xf32, #tpu.memory_space<vmem>>) attributes {dimension_semantics = [], scalar_prefetch = 0 : i64, scratch_operands = 0 : i64, tpu.core_type = #tpu.core_type<tc>} {
    %0 = tpu.iota {dimensions = array<i32: 1>} : vector<8x128xi32>
    %c64_i32 = arith.constant 64 : i32
    %1 = vector.broadcast %c64_i32 : i32 to vector<8x128xi32>
    %2 = arith.cmpi sge, %0, %1 : vector<8x128xi32>
    %c96_i32 = arith.constant 96 : i32
    %3 = vector.broadcast %c96_i32 : i32 to vector<8x128xi32>
    %4 = arith.cmpi slt, %0, %3 : vector<8x128xi32>
    %5 = arith.andi %2, %4 : vector<8x128xi1>
    %c0 = arith.constant 0 : index
    %c0_0 = arith.constant 0 : index
    %6 = vector.load %arg0[%c0, %c0_0] : memref<8x32xf32, #tpu.memory_space<vmem>>, vector<8x32xf32>
    %c0_1 = arith.constant 0 : index
    %c0_2 = arith.constant 0 : index
    %7 = vector.load %arg1[%c0_1, %c0_2] : memref<8x32xf32, #tpu.memory_space<vmem>>, vector<8x32xf32>
    %c0_3 = arith.constant 0 : index
    %c0_4 = arith.constant 0 : index
    %c0_5 = arith.constant 0 : index
    %8 = vector.load %arg2[%c0_3, %c0_4, %c0_5] : memref<4x8x32xf32, #tpu.memory_space<vmem>>, vector<1x8x32xf32>
    %9 = vector.shape_cast %8 : vector<1x8x32xf32> to vector<8x32xf32>
    %cst = arith.constant 0.000000e+00 : f32
    %10 = vector.broadcast %cst : f32 to vector<8x32xf32>
    %11 = tpu.concatenate %6, %7, %9, %10 in 1 : vector<8x32xf32>, vector<8x32xf32>, vector<8x32xf32>, vector<8x32xf32> -> vector<8x128xf32>
    %c0_6 = arith.constant 0 : index
    %c0_7 = arith.constant 0 : index
    %c0_8 = arith.constant 0 : index
    %12 = vector.load %arg4[%c0_6, %c0_7, %c0_8] : memref<4x128x128xf32, #tpu.memory_space<vmem>>, vector<1x128x128xf32>
    %13 = vector.shape_cast %12 : vector<1x128x128xf32> to vector<128x128xf32>
    %cst_9 = arith.constant dense<0.000000e+00> : vector<8x128xf32>
    %14 = tpu.matmul %11, %13, %cst_9 {dimension_numbers = #tpu.dot_dimension_numbers<[1], [0], [0], [1], [0, 0, 1, 1], [], []>, precision = #tpu.contract_precision<fp32>} : vector<8x128xf32>, vector<128x128xf32>, vector<8x128xf32> -> vector<8x128xf32>
    %c0_10 = arith.constant 0 : index
    %c0_11 = arith.constant 0 : index
    %c0_12 = arith.constant 0 : index
    %15 = vector.load %arg5[%c0_10, %c0_11, %c0_12] : memref<4x1x128xf32, #tpu.memory_space<vmem>>, vector<1x1x128xf32>
    %16 = vector.shape_cast %15 : vector<1x1x128xf32> to vector<1x128xf32>
    %17 = vector.broadcast %16 : vector<1x128xf32> to vector<8x128xf32>
    %18 = arith.addf %14, %17 : vector<8x128xf32>
    %19 = math.tanh %18 : vector<8x128xf32>
    %20 = arith.negf %18 : vector<8x128xf32>
    %21 = math.exp %20 : vector<8x128xf32>
    %cst_13 = arith.constant 1.000000e+00 : f32
    %22 = vector.broadcast %cst_13 : f32 to vector<8x128xf32>
    %23 = arith.addf %22, %21 : vector<8x128xf32>
    %24 = arith.divf %22, %23 : vector<8x128xf32>
    %25 = arith.select %5, %19, %24 : vector<8x128xi1>, vector<8x128xf32>
    %26 = vector.extract_strided_slice %25 {offsets = [0, 0], sizes = [8, 32], strides = [1, 1]} : vector<8x128xf32> to vector<8x32xf32>
    %27 = vector.extract_strided_slice %25 {offsets = [0, 32], sizes = [8, 32], strides = [1, 1]} : vector<8x128xf32> to vector<8x32xf32>
    %28 = vector.extract_strided_slice %25 {offsets = [0, 64], sizes = [8, 32], strides = [1, 1]} : vector<8x128xf32> to vector<8x32xf32>
    %29 = vector.extract_strided_slice %25 {offsets = [0, 96], sizes = [8, 32], strides = [1, 1]} : vector<8x128xf32> to vector<8x32xf32>
    %c0_14 = arith.constant 0 : index
    %c0_15 = arith.constant 0 : index
    %c0_16 = arith.constant 0 : index
    %30 = vector.load %arg3[%c0_14, %c0_15, %c0_16] : memref<4x8x32xf32, #tpu.memory_space<vmem>>, vector<1x8x32xf32>
    %31 = vector.shape_cast %30 : vector<1x8x32xf32> to vector<8x32xf32>
    %32 = arith.mulf %27, %31 : vector<8x32xf32>
    %33 = arith.mulf %26, %28 : vector<8x32xf32>
    %34 = arith.addf %32, %33 : vector<8x32xf32>
    %35 = math.tanh %34 : vector<8x32xf32>
    %36 = arith.mulf %29, %35 : vector<8x32xf32>
    %cst_17 = arith.constant 0.000000e+00 : f32
    %37 = vector.broadcast %cst_17 : f32 to vector<8x64xf32>
    %c1 = arith.constant 1 : index
    %c0_18 = arith.constant 0 : index
    %c0_19 = arith.constant 0 : index
    %38 = vector.load %arg2[%c1, %c0_18, %c0_19] : memref<4x8x32xf32, #tpu.memory_space<vmem>>, vector<1x8x32xf32>
    %39 = vector.shape_cast %38 : vector<1x8x32xf32> to vector<8x32xf32>
    %40 = tpu.concatenate %36, %39, %37 in 1 : vector<8x32xf32>, vector<8x32xf32>, vector<8x64xf32> -> vector<8x128xf32>
    %c1_20 = arith.constant 1 : index
    %c0_21 = arith.constant 0 : index
    %c0_22 = arith.constant 0 : index
    %41 = vector.load %arg4[%c1_20, %c0_21, %c0_22] : memref<4x128x128xf32, #tpu.memory_space<vmem>>, vector<1x128x128xf32>
    %42 = vector.shape_cast %41 : vector<1x128x128xf32> to vector<128x128xf32>
    %cst_23 = arith.constant dense<0.000000e+00> : vector<8x128xf32>
    %43 = tpu.matmul %40, %42, %cst_23 {dimension_numbers = #tpu.dot_dimension_numbers<[1], [0], [0], [1], [0, 0, 1, 1], [], []>, precision = #tpu.contract_precision<fp32>} : vector<8x128xf32>, vector<128x128xf32>, vector<8x128xf32> -> vector<8x128xf32>
    %c1_24 = arith.constant 1 : index
    %c0_25 = arith.constant 0 : index
    %c0_26 = arith.constant 0 : index
    %44 = vector.load %arg5[%c1_24, %c0_25, %c0_26] : memref<4x1x128xf32, #tpu.memory_space<vmem>>, vector<1x1x128xf32>
    %45 = vector.shape_cast %44 : vector<1x1x128xf32> to vector<1x128xf32>
    %46 = vector.broadcast %45 : vector<1x128xf32> to vector<8x128xf32>
    %47 = arith.addf %43, %46 : vector<8x128xf32>
    %48 = math.tanh %47 : vector<8x128xf32>
    %49 = arith.negf %47 : vector<8x128xf32>
    %50 = math.exp %49 : vector<8x128xf32>
    %cst_27 = arith.constant 1.000000e+00 : f32
    %51 = vector.broadcast %cst_27 : f32 to vector<8x128xf32>
    %52 = arith.addf %51, %50 : vector<8x128xf32>
    %53 = arith.divf %51, %52 : vector<8x128xf32>
    %54 = arith.select %5, %48, %53 : vector<8x128xi1>, vector<8x128xf32>
    %55 = vector.extract_strided_slice %54 {offsets = [0, 0], sizes = [8, 32], strides = [1, 1]} : vector<8x128xf32> to vector<8x32xf32>
    %56 = vector.extract_strided_slice %54 {offsets = [0, 32], sizes = [8, 32], strides = [1, 1]} : vector<8x128xf32> to vector<8x32xf32>
    %57 = vector.extract_strided_slice %54 {offsets = [0, 64], sizes = [8, 32], strides = [1, 1]} : vector<8x128xf32> to vector<8x32xf32>
    %58 = vector.extract_strided_slice %54 {offsets = [0, 96], sizes = [8, 32], strides = [1, 1]} : vector<8x128xf32> to vector<8x32xf32>
    %c1_28 = arith.constant 1 : index
    %c0_29 = arith.constant 0 : index
    %c0_30 = arith.constant 0 : index
    %59 = vector.load %arg3[%c1_28, %c0_29, %c0_30] : memref<4x8x32xf32, #tpu.memory_space<vmem>>, vector<1x8x32xf32>
    %60 = vector.shape_cast %59 : vector<1x8x32xf32> to vector<8x32xf32>
    %61 = arith.mulf %56, %60 : vector<8x32xf32>
    %62 = arith.mulf %55, %57 : vector<8x32xf32>
    %63 = arith.addf %61, %62 : vector<8x32xf32>
    %64 = math.tanh %63 : vector<8x32xf32>
    %65 = arith.mulf %58, %64 : vector<8x32xf32>
    %c2 = arith.constant 2 : index
    %c0_31 = arith.constant 0 : index
    %c0_32 = arith.constant 0 : index
    %66 = vector.load %arg2[%c2, %c0_31, %c0_32] : memref<4x8x32xf32, #tpu.memory_space<vmem>>, vector<1x8x32xf32>
    %67 = vector.shape_cast %66 : vector<1x8x32xf32> to vector<8x32xf32>
    %68 = tpu.concatenate %65, %67, %37 in 1 : vector<8x32xf32>, vector<8x32xf32>, vector<8x64xf32> -> vector<8x128xf32>
    %c2_33 = arith.constant 2 : index
    %c0_34 = arith.constant 0 : index
    %c0_35 = arith.constant 0 : index
    %69 = vector.load %arg4[%c2_33, %c0_34, %c0_35] : memref<4x128x128xf32, #tpu.memory_space<vmem>>, vector<1x128x128xf32>
    %70 = vector.shape_cast %69 : vector<1x128x128xf32> to vector<128x128xf32>
    %cst_36 = arith.constant dense<0.000000e+00> : vector<8x128xf32>
    %71 = tpu.matmul %68, %70, %cst_36 {dimension_numbers = #tpu.dot_dimension_numbers<[1], [0], [0], [1], [0, 0, 1, 1], [], []>, precision = #tpu.contract_precision<fp32>} : vector<8x128xf32>, vector<128x128xf32>, vector<8x128xf32> -> vector<8x128xf32>
    %c2_37 = arith.constant 2 : index
    %c0_38 = arith.constant 0 : index
    %c0_39 = arith.constant 0 : index
    %72 = vector.load %arg5[%c2_37, %c0_38, %c0_39] : memref<4x1x128xf32, #tpu.memory_space<vmem>>, vector<1x1x128xf32>
    %73 = vector.shape_cast %72 : vector<1x1x128xf32> to vector<1x128xf32>
    %74 = vector.broadcast %73 : vector<1x128xf32> to vector<8x128xf32>
    %75 = arith.addf %71, %74 : vector<8x128xf32>
    %76 = math.tanh %75 : vector<8x128xf32>
    %77 = arith.negf %75 : vector<8x128xf32>
    %78 = math.exp %77 : vector<8x128xf32>
    %cst_40 = arith.constant 1.000000e+00 : f32
    %79 = vector.broadcast %cst_40 : f32 to vector<8x128xf32>
    %80 = arith.addf %79, %78 : vector<8x128xf32>
    %81 = arith.divf %79, %80 : vector<8x128xf32>
    %82 = arith.select %5, %76, %81 : vector<8x128xi1>, vector<8x128xf32>
    %83 = vector.extract_strided_slice %82 {offsets = [0, 0], sizes = [8, 32], strides = [1, 1]} : vector<8x128xf32> to vector<8x32xf32>
    %84 = vector.extract_strided_slice %82 {offsets = [0, 32], sizes = [8, 32], strides = [1, 1]} : vector<8x128xf32> to vector<8x32xf32>
    %85 = vector.extract_strided_slice %82 {offsets = [0, 64], sizes = [8, 32], strides = [1, 1]} : vector<8x128xf32> to vector<8x32xf32>
    %86 = vector.extract_strided_slice %82 {offsets = [0, 96], sizes = [8, 32], strides = [1, 1]} : vector<8x128xf32> to vector<8x32xf32>
    %c2_41 = arith.constant 2 : index
    %c0_42 = arith.constant 0 : index
    %c0_43 = arith.constant 0 : index
    %87 = vector.load %arg3[%c2_41, %c0_42, %c0_43] : memref<4x8x32xf32, #tpu.memory_space<vmem>>, vector<1x8x32xf32>
    %88 = vector.shape_cast %87 : vector<1x8x32xf32> to vector<8x32xf32>
    %89 = arith.mulf %84, %88 : vector<8x32xf32>
    %90 = arith.mulf %83, %85 : vector<8x32xf32>
    %91 = arith.addf %89, %90 : vector<8x32xf32>
    %92 = math.tanh %91 : vector<8x32xf32>
    %93 = arith.mulf %86, %92 : vector<8x32xf32>
    %c3 = arith.constant 3 : index
    %c0_44 = arith.constant 0 : index
    %c0_45 = arith.constant 0 : index
    %94 = vector.load %arg2[%c3, %c0_44, %c0_45] : memref<4x8x32xf32, #tpu.memory_space<vmem>>, vector<1x8x32xf32>
    %95 = vector.shape_cast %94 : vector<1x8x32xf32> to vector<8x32xf32>
    %96 = tpu.concatenate %93, %95, %37 in 1 : vector<8x32xf32>, vector<8x32xf32>, vector<8x64xf32> -> vector<8x128xf32>
    %c3_46 = arith.constant 3 : index
    %c0_47 = arith.constant 0 : index
    %c0_48 = arith.constant 0 : index
    %97 = vector.load %arg4[%c3_46, %c0_47, %c0_48] : memref<4x128x128xf32, #tpu.memory_space<vmem>>, vector<1x128x128xf32>
    %98 = vector.shape_cast %97 : vector<1x128x128xf32> to vector<128x128xf32>
    %cst_49 = arith.constant dense<0.000000e+00> : vector<8x128xf32>
    %99 = tpu.matmul %96, %98, %cst_49 {dimension_numbers = #tpu.dot_dimension_numbers<[1], [0], [0], [1], [0, 0, 1, 1], [], []>, precision = #tpu.contract_precision<fp32>} : vector<8x128xf32>, vector<128x128xf32>, vector<8x128xf32> -> vector<8x128xf32>
    %c3_50 = arith.constant 3 : index
    %c0_51 = arith.constant 0 : index
    %c0_52 = arith.constant 0 : index
    %100 = vector.load %arg5[%c3_50, %c0_51, %c0_52] : memref<4x1x128xf32, #tpu.memory_space<vmem>>, vector<1x1x128xf32>
    %101 = vector.shape_cast %100 : vector<1x1x128xf32> to vector<1x128xf32>
    %102 = vector.broadcast %101 : vector<1x128xf32> to vector<8x128xf32>
    %103 = arith.addf %99, %102 : vector<8x128xf32>
    %104 = math.tanh %103 : vector<8x128xf32>
    %105 = arith.negf %103 : vector<8x128xf32>
    %106 = math.exp %105 : vector<8x128xf32>
    %cst_53 = arith.constant 1.000000e+00 : f32
    %107 = vector.broadcast %cst_53 : f32 to vector<8x128xf32>
    %108 = arith.addf %107, %106 : vector<8x128xf32>
    %109 = arith.divf %107, %108 : vector<8x128xf32>
    %110 = arith.select %5, %104, %109 : vector<8x128xi1>, vector<8x128xf32>
    %111 = vector.extract_strided_slice %110 {offsets = [0, 0], sizes = [8, 32], strides = [1, 1]} : vector<8x128xf32> to vector<8x32xf32>
    %112 = vector.extract_strided_slice %110 {offsets = [0, 32], sizes = [8, 32], strides = [1, 1]} : vector<8x128xf32> to vector<8x32xf32>
    %113 = vector.extract_strided_slice %110 {offsets = [0, 64], sizes = [8, 32], strides = [1, 1]} : vector<8x128xf32> to vector<8x32xf32>
    %114 = vector.extract_strided_slice %110 {offsets = [0, 96], sizes = [8, 32], strides = [1, 1]} : vector<8x128xf32> to vector<8x32xf32>
    %c3_54 = arith.constant 3 : index
    %c0_55 = arith.constant 0 : index
    %c0_56 = arith.constant 0 : index
    %115 = vector.load %arg3[%c3_54, %c0_55, %c0_56] : memref<4x8x32xf32, #tpu.memory_space<vmem>>, vector<1x8x32xf32>
    %116 = vector.shape_cast %115 : vector<1x8x32xf32> to vector<8x32xf32>
    %117 = arith.mulf %112, %116 : vector<8x32xf32>
    %118 = arith.mulf %111, %113 : vector<8x32xf32>
    %119 = arith.addf %117, %118 : vector<8x32xf32>
    %120 = math.tanh %119 : vector<8x32xf32>
    %121 = arith.mulf %114, %120 : vector<8x32xf32>
    %122 = tpu.concatenate %36, %65, %93, %121 in 1 : vector<8x32xf32>, vector<8x32xf32>, vector<8x32xf32>, vector<8x32xf32> -> vector<8x128xf32>
    %c0_57 = arith.constant 0 : index
    %c0_58 = arith.constant 0 : index
    %123 = vector.load %arg6[%c0_57, %c0_58] : memref<8x128xf32, #tpu.memory_space<vmem>>, vector<8x128xf32>
    tpu.vector_store %arg6[%c0_57, %c0_58], %122 {strides = array<i32>} : memref<8x128xf32, #tpu.memory_space<vmem>>, vector<8x128xf32>,
    %124 = tpu.concatenate %34, %63, %91, %119 in 1 : vector<8x32xf32>, vector<8x32xf32>, vector<8x32xf32>, vector<8x32xf32> -> vector<8x128xf32>
    %c0_59 = arith.constant 0 : index
    %c0_60 = arith.constant 0 : index
    %125 = vector.load %arg7[%c0_59, %c0_60] : memref<8x128xf32, #tpu.memory_space<vmem>>, vector<8x128xf32>
    tpu.vector_store %arg7[%c0_59, %c0_60], %124 {strides = array<i32>} : memref<8x128xf32, #tpu.memory_space<vmem>>, vector<8x128xf32>,
    return
  }
}

</mosaic_0001>

<llo_original>
// kernel: decoder_forward.1
$region0: #{decoder_forward.1}
  #allocation0 [shape = 'u32[]', space=smem, size = 0x4, offset = 0x4, fixed_abs, tag = 'smem constant byte address 0x4 - core index']
  #allocation1 [shape = 'u32[72,128]{1,0:T(1,128)}', space=vmem, size = 0x9000, scoped, tag = 'internal scratch']
  %s0 = inlined_call_operand.hbm [shape: f32[8,32], index: 0, kind: input, shape index: {}]
  %s1 = inlined_call_operand.hbm [shape: f32[8,32], index: 1, kind: input, shape index: {}]
  %s2 = inlined_call_operand.hbm [shape: f32[4,8,32], index: 2, kind: input, shape index: {}]
  %s3 = inlined_call_operand.hbm [shape: f32[4,8,32], index: 3, kind: input, shape index: {}]
  %s4 = inlined_call_operand.hbm [shape: f32[4,128,128], index: 4, kind: input, shape index: {}]
  %s5 = inlined_call_operand.hbm [shape: f32[4,1,128], index: 5, kind: input, shape index: {}]
  %s6 = inlined_call_operand.vmem [shape: f32[8,128], index: 6, kind: output, shape index: {0}]
  %s7 = inlined_call_operand.vmem [shape: f32[8,128], index: 7, kind: output, shape index: {1}]
  %8 = xla_tuple %s6, %s7
  %s9 = sld [smem:[#allocation0]]
  $region66: #{decoder_forward.1} parent=0
    _
  %s11 = ssub.s32 1, %s9
  %s12 = scalar_select 0, %s11, %s9
  $region1: #{decoder_forward.1} parent=0
    #allocation2 [shape = 'u8[4096]{0}', space=vmem, size = 0x1000, scoped, tag = 'input window, operand 0, single buffered']
    #allocation3 [shape = 's32[1]{0}', space=sflag, size = 0x4, scoped, tag = 'scoped memory for decoder_forward.1']
    #allocation4 [shape = 'u8[4096]{0}', space=vmem, size = 0x1000, scoped, tag = 'input window, operand 1, single buffered']
    #allocation5 [shape = 's32[1]{0}', space=sflag, size = 0x4, scoped, tag = 'scoped memory for decoder_forward.1']
    #allocation6 [shape = 'u8[16384]{0}', space=vmem, size = 0x4000, scoped, tag = 'input window, operand 2, single buffered']
    #allocation7 [shape = 'u8[16384]{0}', space=vmem, size = 0x4000, scoped, tag = 'input window, operand 3, single buffered']
    #allocation8 [shape = 's32[1]{0}', space=sflag, size = 0x4, scoped, tag = 'scoped memory for decoder_forward.1']
    #allocation9 [shape = 'u8[262144]{0}', space=vmem, size = 0x40000, scoped, tag = 'input window, operand 4, single buffered']
    #allocation10 [shape = 'u8[2048]{0}', space=vmem, size = 0x800, scoped, tag = 'input window, operand 5, single buffered']
    #allocation11 [shape = 's32[1]{0}', space=sflag, size = 0x4, scoped, tag = 'scoped memory for decoder_forward.1']
    %13 = vsyncpa [#allocation3], 0
    %14 = vsyncpa [#allocation5], 0
    %15 = vsyncpa [#allocation8], 0
    %16 = vsyncpa [#allocation11], 0
    // Predicated region
    $region2: #{decoder_forward.1} parent=1 // pred_check
      _
    $region3: #{decoder_forward.1} parent=1 // pred_check_branch
      %18 = sbr.rel (0) target = $region5
    $region4: #{decoder_forward.1} parent=1 // pred_region
      %20 = vsyncadd [#allocation3], 0
      %s22 = sshll.u32 %s0, 4
      %s23 = int_to_ptr.hbm [resolvable:$true] %s22
      %s24 = sshll.u32 [#allocation2], 4
      %s25 = int_to_ptr.vmem [resolvable:$true] %s24
      %27 = dma.hbm_to_vmem [thread:$0]  %s23, 128, %s25, [#allocation3]
    $region5: #{decoder_forward.1} parent=1 // pred_fallthru
      _
    // Predicated region
    $region6: #{decoder_forward.1} parent=1 // pred_check
      _
    $region7: #{decoder_forward.1} parent=1 // pred_check_branch
      %29 = sbr.rel (0) target = $region9
    $region8: #{decoder_forward.1} parent=1 // pred_region
      %31 = vsyncadd [#allocation5], 0
      %s33 = sshll.u32 %s1, 4
      %s34 = int_to_ptr.hbm [resolvable:$true] %s33
      %s35 = sshll.u32 [#allocation4], 4
      %s36 = int_to_ptr.vmem [resolvable:$true] %s35
      %38 = dma.hbm_to_vmem [thread:$0]  %s34, 128, %s36, [#allocation5]
    $region9: #{decoder_forward.1} parent=1 // pred_fallthru
      _
    // Predicated region
    $region10: #{decoder_forward.1} parent=1 // pred_check
      _
    $region11: #{decoder_forward.1} parent=1 // pred_check_branch
      %40 = sbr.rel (0) target = $region13
    $region12: #{decoder_forward.1} parent=1 // pred_region
      %42 = vsyncadd [#allocation5], 0
      %s43 = sshll.u32 %s2, 4
      %s44 = int_to_ptr.hbm [resolvable:$true] %s43
      %s45 = sshll.u32 [#allocation6], 4
      %s46 = int_to_ptr.vmem [resolvable:$true] %s45
      %51 = dma.hbm_to_vmem [thread:$0]  %s44, 512, %s46, [#allocation5], 128, 128, 8
    $region13: #{decoder_forward.1} parent=1 // pred_fallthru
      _
    // Predicated region
    $region14: #{decoder_forward.1} parent=1 // pred_check
      _
    $region15: #{decoder_forward.1} parent=1 // pred_check_branch
      %53 = sbr.rel (0) target = $region17
    $region16: #{decoder_forward.1} parent=1 // pred_region
      %55 = vsyncadd [#allocation8], 0
      %s56 = sshll.u32 %s3, 4
      %s57 = int_to_ptr.hbm [resolvable:$true] %s56
      %s58 = sshll.u32 [#allocation7], 4
      %s59 = int_to_ptr.vmem [resolvable:$true] %s58
      %64 = dma.hbm_to_vmem [thread:$0]  %s57, 512, %s59, [#allocation8], 128, 128, 8
    $region17: #{decoder_forward.1} parent=1 // pred_fallthru
      _
    // Predicated region
    $region18: #{decoder_forward.1} parent=1 // pred_check
      _
    $region19: #{decoder_forward.1} parent=1 // pred_check_branch
      %66 = sbr.rel (0) target = $region21
    $region20: #{decoder_forward.1} parent=1 // pred_region
      %68 = vsyncadd [#allocation8], 0
      %s69 = sshll.u32 %s4, 4
      %s70 = int_to_ptr.hbm [resolvable:$true] %s69
      %s71 = sshll.u32 [#allocation9], 4
      %s72 = int_to_ptr.vmem [resolvable:$true] %s71
      %77 = dma.hbm_to_vmem [thread:$0]  %s70, 8192, %s72, [#allocation8], 128, 128, 8
    $region21: #{decoder_forward.1} parent=1 // pred_fallthru
      _
    // Predicated region
    $region22: #{decoder_forward.1} parent=1 // pred_check
      _
    $region23: #{decoder_forward.1} parent=1 // pred_check_branch
      %79 = sbr.rel (0) target = $region25
    $region24: #{decoder_forward.1} parent=1 // pred_region
      %81 = vsyncadd [#allocation11], 0
      %s82 = sshll.u32 %s5, 4
      %s83 = int_to_ptr.hbm [resolvable:$true] %s82
      %s84 = sshll.u32 [#allocation10], 4
      %s85 = int_to_ptr.vmem [resolvable:$true] %s84
      %90 = dma.hbm_to_vmem [thread:$0]  %s83, 64, %s85, [#allocation11], 16, 16, 1
    $region25: #{decoder_forward.1} parent=1 // pred_fallthru
      _
    // Predicated region
    $region26: #{decoder_forward.1} parent=1 // pred_check
      _
    $region27: #{decoder_forward.1} parent=1 // pred_check_branch
      %92 = sbr.rel (0) target = $region29
    $region28: #{decoder_forward.1} parent=1 // pred_region
      %94 = dma.done [#allocation3], 128
    $region29: #{decoder_forward.1} parent=1 // pred_fallthru
      _
    // Predicated region
    $region30: #{decoder_forward.1} parent=1 // pred_check
      _
    $region31: #{decoder_forward.1} parent=1 // pred_check_branch
      %96 = sbr.rel (0) target = $region33
    $region32: #{decoder_forward.1} parent=1 // pred_region
      %98 = dma.done [#allocation5], 128
    $region33: #{decoder_forward.1} parent=1 // pred_fallthru
      _
    // Predicated region
    $region34: #{decoder_forward.1} parent=1 // pred_check
      _
    $region35: #{decoder_forward.1} parent=1 // pred_check_branch
      %100 = sbr.rel (0) target = $region37
    $region36: #{decoder_forward.1} parent=1 // pred_region
      %102 = dma.done [#allocation5], 512
    $region37: #{decoder_forward.1} parent=1 // pred_fallthru
      _
    // Predicated region
    $region38: #{decoder_forward.1} parent=1 // pred_check
      _
    $region39: #{decoder_forward.1} parent=1 // pred_check_branch
      %104 = sbr.rel (0) target = $region41
    $region40: #{decoder_forward.1} parent=1 // pred_region
      %106 = dma.done [#allocation8], 512
    $region41: #{decoder_forward.1} parent=1 // pred_fallthru
      _
    // Predicated region
    $region42: #{decoder_forward.1} parent=1 // pred_check
      _
    $region43: #{decoder_forward.1} parent=1 // pred_check_branch
      %108 = sbr.rel (0) target = $region45
    $region44: #{decoder_forward.1} parent=1 // pred_region
      %110 = dma.done [#allocation8], 8192
    $region45: #{decoder_forward.1} parent=1 // pred_fallthru
      _
    // Predicated region
    $region46: #{decoder_forward.1} parent=1 // pred_check
      _
    $region47: #{decoder_forward.1} parent=1 // pred_check_branch
      %112 = sbr.rel (0) target = $region49
    $region48: #{decoder_forward.1} parent=1 // pred_region
      %114 = dma.done [#allocation11], 64
    $region49: #{decoder_forward.1} parent=1 // pred_fallthru
      _
    %v115 = vlaneseq
    %v116 = vand.u32 %v115, 127
    %vm117 = vcmp.ge.s32.totalorder %v116, 64
    %vm118 = vcmp.lt.s32.totalorder %v116, 96
    %vm119 = vmand %vm117, %vm118
    %v120 = vld [vmem:[#allocation2] sm:$0xff]
    %v121 = vld [vmem:[#allocation4] sm:$0xff]
    %v122 = vld [vmem:[#allocation6] sm:$0xff]
    %124 = vrot.lane.b32.xlu0 %v121, 32
    %v125 = vpop.permute.xlu0 %124
    %128 = vrot.lane.b32.xlu0 %v122, 64
    %v129 = vpop.permute.xlu0 %128
    %vm131 = vcmask 261120
    %v132 = vsel %vm131, %v120, %v125
    %vm133 = vcmask 523264
    %v134 = vsel %vm133, %v132, %v129
    %vm135 = vcmask 785408
    %v136 = vsel %vm135, %v134, 0.0
    %v137 = vld [vmem:[#allocation9] sm:$0xff]
    %v138 = vld [vmem:[#allocation9 + $0x8] sm:$0xff]
    %v139 = vld [vmem:[#allocation9 + $0x10] sm:$0xff]
    %v140 = vld [vmem:[#allocation9 + $0x18] sm:$0xff]
    %v141 = vld [vmem:[#allocation9 + $0x20] sm:$0xff]
    %v142 = vld [vmem:[#allocation9 + $0x28] sm:$0xff]
    %v143 = vld [vmem:[#allocation9 + $0x30] sm:$0xff]
    %v144 = vld [vmem:[#allocation9 + $0x38] sm:$0xff]
    %v145 = vld [vmem:[#allocation9 + $0x40] sm:$0xff]
    %v146 = vld [vmem:[#allocation9 + $0x48] sm:$0xff]
    %v147 = vld [vmem:[#allocation9 + $0x50] sm:$0xff]
    %v148 = vld [vmem:[#allocation9 + $0x58] sm:$0xff]
    %v149 = vld [vmem:[#allocation9 + $0x60] sm:$0xff]
    %v150 = vld [vmem:[#allocation9 + $0x68] sm:$0xff]
    %v151 = vld [vmem:[#allocation9 + $0x70] sm:$0xff]
    %v152 = vld [vmem:[#allocation9 + $0x78] sm:$0xff]
    %v153 = vld [vmem:[#allocation10] sm:$0x1]
    %v155 = vperm.slane %v153, 0
    %v157 = vand.u32 %v152, 4294901760
    %158 = vmatpush.msra.mxu0 %v157
    %v159 = vand.u32 %v151, 4294901760
    %160 = vmatpush.msra.mxu0 %v159
    %v161 = vand.u32 %v150, 4294901760
    %162 = vmatpush.msra.mxu0 %v161
    %v163 = vand.u32 %v149, 4294901760
    %164 = vmatpush.msra.mxu0 %v163
    %v165 = vand.u32 %v148, 4294901760
    %166 = vmatpush.msra.mxu0 %v165
    %v167 = vand.u32 %v147, 4294901760
    %168 = vmatpush.msra.mxu0 %v167
    %v169 = vand.u32 %v146, 4294901760
    %170 = vmatpush.msra.mxu0 %v169
    %v171 = vand.u32 %v145, 4294901760
    %172 = vmatpush.msra.mxu0 %v171
    %v173 = vand.u32 %v144, 4294901760
    %174 = vmatpush.msra.mxu0 %v173
    %v175 = vand.u32 %v143, 4294901760
    %176 = vmatpush.msra.mxu0 %v175
    %v177 = vand.u32 %v142, 4294901760
    %178 = vmatpush.msra.mxu0 %v177
    %v179 = vand.u32 %v141, 4294901760
    %180 = vmatpush.msra.mxu0 %v179
    %v181 = vand.u32 %v140, 4294901760
    %182 = vmatpush.msra.mxu0 %v181
    %v183 = vand.u32 %v139, 4294901760
    %184 = vmatpush.msra.mxu0 %v183
    %v185 = vand.u32 %v138, 4294901760
    %186 = vmatpush.msra.mxu0 %v185
    %v187 = vand.u32 %v137, 4294901760
    %188 = vmatpush.msra.mxu0 %v187
    %v189 = vand.u32 %v136, 4294901760
    %v190 = vsub.f32 %v136, %v189
    %v191 = vand.u32 %v190, 4294901760
    %v192 = vsub.f32 %v190, %v191
    %v193 = vand.u32 %v192, 4294901760
    %194 = vmatmul.f32.gmra.mxu0 %v193
    %v195 = vpop.f32.mrf.mxu0
    %v196 = vadd.f32 %v155, %v195
    %197 = vdwg.mxu0
    %v198 = vand.u32 %v152, 4294901760
    %v199 = vsub.f32 %v152, %v198
    %v200 = vand.u32 %v199, 4294901760
    %v201 = vsub.f32 %v199, %v200
    %v202 = vand.u32 %v201, 4294901760
    %203 = vmatpush.msra.mxu0 %v202
    %v204 = vand.u32 %v151, 4294901760
    %v205 = vsub.f32 %v151, %v204
    %v206 = vand.u32 %v205, 4294901760
    %v207 = vsub.f32 %v205, %v206
    %v208 = vand.u32 %v207, 4294901760
    %209 = vmatpush.msra.mxu0 %v208
    %v210 = vand.u32 %v150, 4294901760
    %v211 = vsub.f32 %v150, %v210
    %v212 = vand.u32 %v211, 4294901760
    %v213 = vsub.f32 %v211, %v212
    %v214 = vand.u32 %v213, 4294901760
    %215 = vmatpush.msra.mxu0 %v214
    %v216 = vand.u32 %v149, 4294901760
    %v217 = vsub.f32 %v149, %v216
    %v218 = vand.u32 %v217, 4294901760
    %v219 = vsub.f32 %v217, %v218
    %v220 = vand.u32 %v219, 4294901760
    %221 = vmatpush.msra.mxu0 %v220
    %v222 = vand.u32 %v148, 4294901760
    %v223 = vsub.f32 %v148, %v222
    %v224 = vand.u32 %v223, 4294901760
    %v225 = vsub.f32 %v223, %v224
    %v226 = vand.u32 %v225, 4294901760
    %227 = vmatpush.msra.mxu0 %v226
    %v228 = vand.u32 %v147, 4294901760
    %v229 = vsub.f32 %v147, %v228
    %v230 = vand.u32 %v229, 4294901760
    %v231 = vsub.f32 %v229, %v230
    %v232 = vand.u32 %v231, 4294901760
    %233 = vmatpush.msra.mxu0 %v232
    %v234 = vand.u32 %v146, 4294901760
    %v235 = vsub.f32 %v146, %v234
    %v236 = vand.u32 %v235, 4294901760
    %v237 = vsub.f32 %v235, %v236
    %v238 = vand.u32 %v237, 4294901760
    %239 = vmatpush.msra.mxu0 %v238
    %v240 = vand.u32 %v145, 4294901760
    %v241 = vsub.f32 %v145, %v240
    %v242 = vand.u32 %v241, 4294901760
    %v243 = vsub.f32 %v241, %v242
    %v244 = vand.u32 %v243, 4294901760
    %245 = vmatpush.msra.mxu0 %v244
    %v246 = vand.u32 %v144, 4294901760
    %v247 = vsub.f32 %v144, %v246
    %v248 = vand.u32 %v247, 4294901760
    %v249 = vsub.f32 %v247, %v248
    %v250 = vand.u32 %v249, 4294901760
    %251 = vmatpush.msra.mxu0 %v250
    %v252 = vand.u32 %v143, 4294901760
    %v253 = vsub.f32 %v143, %v252
    %v254 = vand.u32 %v253, 4294901760
    %v255 = vsub.f32 %v253, %v254
    %v256 = vand.u32 %v255, 4294901760
    %257 = vmatpush.msra.mxu0 %v256
    %v258 = vand.u32 %v142, 4294901760
    %v259 = vsub.f32 %v142, %v258
    %v260 = vand.u32 %v259, 4294901760
    %v261 = vsub.f32 %v259, %v260
    %v262 = vand.u32 %v261, 4294901760
    %263 = vmatpush.msra.mxu0 %v262
    %v264 = vand.u32 %v141, 4294901760
    %v265 = vsub.f32 %v141, %v264
    %v266 = vand.u32 %v265, 4294901760
    %v267 = vsub.f32 %v265, %v266
    %v268 = vand.u32 %v267, 4294901760
    %269 = vmatpush.msra.mxu0 %v268
    %v270 = vand.u32 %v140, 4294901760
    %v271 = vsub.f32 %v140, %v270
    %v272 = vand.u32 %v271, 4294901760
    %v273 = vsub.f32 %v271, %v272
    %v274 = vand.u32 %v273, 4294901760
    %275 = vmatpush.msra.mxu0 %v274
    %v276 = vand.u32 %v139, 4294901760
    %v277 = vsub.f32 %v139, %v276
    %v278 = vand.u32 %v277, 4294901760
    %v279 = vsub.f32 %v277, %v278
    %v280 = vand.u32 %v279, 4294901760
    %281 = vmatpush.msra.mxu0 %v280
    %v282 = vand.u32 %v138, 4294901760
    %v283 = vsub.f32 %v138, %v282
    %v284 = vand.u32 %v283, 4294901760
    %v285 = vsub.f32 %v283, %v284
    %v286 = vand.u32 %v285, 4294901760
    %287 = vmatpush.msra.mxu0 %v286
    %v288 = vand.u32 %v137, 4294901760
    %v289 = vsub.f32 %v137, %v288
    %v290 = vand.u32 %v289, 4294901760
    %v291 = vsub.f32 %v289, %v290
    %v292 = vand.u32 %v291, 4294901760
    %293 = vmatpush.msra.mxu0 %v292
    %v294 = vand.u32 %v136, 4294901760
    %295 = vmatmul.f32.gmra.mxu0 %v294
    %v296 = vpop.f32.mrf.mxu0
    %v297 = vadd.f32 %v196, %v296
    %298 = vdwg.mxu0
    %v299 = vand.u32 %v152, 4294901760
    %v300 = vsub.f32 %v152, %v299
    %301 = vmatpush.msra.mxu0 %v300
    %v302 = vand.u32 %v151, 4294901760
    %v303 = vsub.f32 %v151, %v302
    %304 = vmatpush.msra.mxu0 %v303
    %v305 = vand.u32 %v150, 4294901760
    %v306 = vsub.f32 %v150, %v305
    %307 = vmatpush.msra.mxu0 %v306
    %v308 = vand.u32 %v149, 4294901760
    %v309 = vsub.f32 %v149, %v308
    %310 = vmatpush.msra.mxu0 %v309
    %v311 = vand.u32 %v148, 4294901760
    %v312 = vsub.f32 %v148, %v311
    %313 = vmatpush.msra.mxu0 %v312
    %v314 = vand.u32 %v147, 4294901760
    %v315 = vsub.f32 %v147, %v314
    %316 = vmatpush.msra.mxu0 %v315
    %v317 = vand.u32 %v146, 4294901760
    %v318 = vsub.f32 %v146, %v317
    %319 = vmatpush.msra.mxu0 %v318
    %v320 = vand.u32 %v145, 4294901760
    %v321 = vsub.f32 %v145, %v320
    %322 = vmatpush.msra.mxu0 %v321
    %v323 = vand.u32 %v144, 4294901760
    %v324 = vsub.f32 %v144, %v323
    %325 = vmatpush.msra.mxu0 %v324
    %v326 = vand.u32 %v143, 4294901760
    %v327 = vsub.f32 %v143, %v326
    %328 = vmatpush.msra.mxu0 %v327
    %v329 = vand.u32 %v142, 4294901760
    %v330 = vsub.f32 %v142, %v329
    %331 = vmatpush.msra.mxu0 %v330
    %v332 = vand.u32 %v141, 4294901760
    %v333 = vsub.f32 %v141, %v332
    %334 = vmatpush.msra.mxu0 %v333
    %v335 = vand.u32 %v140, 4294901760
    %v336 = vsub.f32 %v140, %v335
    %337 = vmatpush.msra.mxu0 %v336
    %v338 = vand.u32 %v139, 4294901760
    %v339 = vsub.f32 %v139, %v338
    %340 = vmatpush.msra.mxu0 %v339
    %v341 = vand.u32 %v138, 4294901760
    %v342 = vsub.f32 %v138, %v341
    %343 = vmatpush.msra.mxu0 %v342
    %v344 = vand.u32 %v137, 4294901760
    %v345 = vsub.f32 %v137, %v344
    %346 = vmatpush.msra.mxu0 %v345
    %v347 = vand.u32 %v136, 4294901760
    %v348 = vsub.f32 %v136, %v347
    %349 = vmatmul.f32.gmra.mxu0 %v348
    %v350 = vpop.f32.mrf.mxu0
    %v351 = vadd.f32 %v297, %v350
    %352 = vdwg.mxu0
    %v353 = vand.u32 %v152, 4294901760
    %354 = vmatpush.msra.mxu0 %v353
    %v355 = vand.u32 %v151, 4294901760
    %356 = vmatpush.msra.mxu0 %v355
    %v357 = vand.u32 %v150, 4294901760
    %358 = vmatpush.msra.mxu0 %v357
    %v359 = vand.u32 %v149, 4294901760
    %360 = vmatpush.msra.mxu0 %v359
    %v361 = vand.u32 %v148, 4294901760
    %362 = vmatpush.msra.mxu0 %v361
    %v363 = vand.u32 %v147, 4294901760
    %364 = vmatpush.msra.mxu0 %v363
    %v365 = vand.u32 %v146, 4294901760
    %366 = vmatpush.msra.mxu0 %v365
    %v367 = vand.u32 %v145, 4294901760
    %368 = vmatpush.msra.mxu0 %v367
    %v369 = vand.u32 %v144, 4294901760
    %370 = vmatpush.msra.mxu0 %v369
    %v371 = vand.u32 %v143, 4294901760
    %372 = vmatpush.msra.mxu0 %v371
    %v373 = vand.u32 %v142, 4294901760
    %374 = vmatpush.msra.mxu0 %v373
    %v375 = vand.u32 %v141, 4294901760
    %376 = vmatpush.msra.mxu0 %v375
    %v377 = vand.u32 %v140, 4294901760
    %378 = vmatpush.msra.mxu0 %v377
    %v379 = vand.u32 %v139, 4294901760
    %380 = vmatpush.msra.mxu0 %v379
    %v381 = vand.u32 %v138, 4294901760
    %382 = vmatpush.msra.mxu0 %v381
    %v383 = vand.u32 %v137, 4294901760
    %384 = vmatpush.msra.mxu0 %v383
    %v385 = vand.u32 %v136, 4294901760
    %v386 = vsub.f32 %v136, %v385
    %v387 = vand.u32 %v386, 4294901760
    %388 = vmatmul.f32.gmra.mxu0 %v387
    %v389 = vpop.f32.mrf.mxu0
    %v390 = vadd.f32 %v351, %v389
    %391 = vdwg.mxu0
    %v392 = vand.u32 %v152, 4294901760
    %v393 = vsub.f32 %v152, %v392
    %v394 = vand.u32 %v393, 4294901760
    %395 = vmatpush.msra.mxu0 %v394
    %v396 = vand.u32 %v151, 4294901760
    %v397 = vsub.f32 %v151, %v396
    %v398 = vand.u32 %v397, 4294901760
    %399 = vmatpush.msra.mxu0 %v398
    %v400 = vand.u32 %v150, 4294901760
    %v401 = vsub.f32 %v150, %v400
    %v402 = vand.u32 %v401, 4294901760
    %403 = vmatpush.msra.mxu0 %v402
    %v404 = vand.u32 %v149, 4294901760
    %v405 = vsub.f32 %v149, %v404
    %v406 = vand.u32 %v405, 4294901760
    %407 = vmatpush.msra.mxu0 %v406
    %v408 = vand.u32 %v148, 4294901760
    %v409 = vsub.f32 %v148, %v408
    %v410 = vand.u32 %v409, 4294901760
    %411 = vmatpush.msra.mxu0 %v410
    %v412 = vand.u32 %v147, 4294901760
    %v413 = vsub.f32 %v147, %v412
    %v414 = vand.u32 %v413, 4294901760
    %415 = vmatpush.msra.mxu0 %v414
    %v416 = vand.u32 %v146, 4294901760
    %v417 = vsub.f32 %v146, %v416
    %v418 = vand.u32 %v417, 4294901760
    %419 = vmatpush.msra.mxu0 %v418
    %v420 = vand.u32 %v145, 4294901760
    %v421 = vsub.f32 %v145, %v420
    %v422 = vand.u32 %v421, 4294901760
    %423 = vmatpush.msra.mxu0 %v422
    %v424 = vand.u32 %v144, 4294901760
    %v425 = vsub.f32 %v144, %v424
    %v426 = vand.u32 %v425, 4294901760
    %427 = vmatpush.msra.mxu0 %v426
    %v428 = vand.u32 %v143, 4294901760
    %v429 = vsub.f32 %v143, %v428
    %v430 = vand.u32 %v429, 4294901760
    %431 = vmatpush.msra.mxu0 %v430
    %v432 = vand.u32 %v142, 4294901760
    %v433 = vsub.f32 %v142, %v432
    %v434 = vand.u32 %v433, 4294901760
    %435 = vmatpush.msra.mxu0 %v434
    %v436 = vand.u32 %v141, 4294901760
    %v437 = vsub.f32 %v141, %v436
    %v438 = vand.u32 %v437, 4294901760
    %439 = vmatpush.msra.mxu0 %v438
    %v440 = vand.u32 %v140, 4294901760
    %v441 = vsub.f32 %v140, %v440
    %v442 = vand.u32 %v441, 4294901760
    %443 = vmatpush.msra.mxu0 %v442
    %v444 = vand.u32 %v139, 4294901760
    %v445 = vsub.f32 %v139, %v444
    %v446 = vand.u32 %v445, 4294901760
    %447 = vmatpush.msra.mxu0 %v446
    %v448 = vand.u32 %v138, 4294901760
    %v449 = vsub.f32 %v138, %v448
    %v450 = vand.u32 %v449, 4294901760
    %451 = vmatpush.msra.mxu0 %v450
    %v452 = vand.u32 %v137, 4294901760
    %v453 = vsub.f32 %v137, %v452
    %v454 = vand.u32 %v453, 4294901760
    %455 = vmatpush.msra.mxu0 %v454
    %v456 = vand.u32 %v136, 4294901760
    %457 = vmatmul.f32.gmra.mxu0 %v456
    %v458 = vpop.f32.mrf.mxu0
    %v459 = vadd.f32 %v390, %v458
    %460 = vdwg.mxu0
    %v461 = vand.u32 %v152, 4294901760
    %462 = vmatpush.msra.mxu0 %v461
    %v463 = vand.u32 %v151, 4294901760
    %464 = vmatpush.msra.mxu0 %v463
    %v465 = vand.u32 %v150, 4294901760
    %466 = vmatpush.msra.mxu0 %v465
    %v467 = vand.u32 %v149, 4294901760
    %468 = vmatpush.msra.mxu0 %v467
    %v469 = vand.u32 %v148, 4294901760
    %470 = vmatpush.msra.mxu0 %v469
    %v471 = vand.u32 %v147, 4294901760
    %472 = vmatpush.msra.mxu0 %v471
    %v473 = vand.u32 %v146, 4294901760
    %474 = vmatpush.msra.mxu0 %v473
    %v475 = vand.u32 %v145, 4294901760
    %476 = vmatpush.msra.mxu0 %v475
    %v477 = vand.u32 %v144, 4294901760
    %478 = vmatpush.msra.mxu0 %v477
    %v479 = vand.u32 %v143, 4294901760
    %480 = vmatpush.msra.mxu0 %v479
    %v481 = vand.u32 %v142, 4294901760
    %482 = vmatpush.msra.mxu0 %v481
    %v483 = vand.u32 %v141, 4294901760
    %484 = vmatpush.msra.mxu0 %v483
    %v485 = vand.u32 %v140, 4294901760
    %486 = vmatpush.msra.mxu0 %v485
    %v487 = vand.u32 %v139, 4294901760
    %488 = vmatpush.msra.mxu0 %v487
    %v489 = vand.u32 %v138, 4294901760
    %490 = vmatpush.msra.mxu0 %v489
    %v491 = vand.u32 %v137, 4294901760
    %492 = vmatpush.msra.mxu0 %v491
    %v493 = vand.u32 %v136, 4294901760
    %494 = vmatmul.f32.gmra.mxu0 %v493
    %v495 = vpop.f32.mrf.mxu0
    %v496 = vadd.f32 %v459, %v495
    %497 = vdwg.mxu0
    %v498 = vtanh.pop %v496
    %v499 = vxor.u32 %v496, 2147483648
    %v500 = vmul.f32 %v499, 1.442695
    %v501 = vpow.pop %v500
    %v502 = vadd.f32 %v501, 1.0
    %v503 = vrcp.pop %v502
    %v504 = vmul.f32 %v502, %v503
    %v505 = vsub.f32 1.0, %v504
    %v506 = vmul.f32 %v503, %v505
    %v507 = vadd.f32 %v503, %v506
    %vm508 = vweird.f32 %v502
    %vm509 = vweird.f32 %v503
    %vm510 = vmor %vm508, %vm509
    %v511 = vsel %vm510, %v503, %v507
    %v512 = vand.u32 2147483647, %v502
    %vm513 = vcmp.eq.f32.partialorder %v512, 8.507059e+37
    %v514 = vand.u32 %v502, 2147483648
    %v515 = vor.u32 1.1754944e-38, %v514
    %v516 = vsel %vm513, %v515, %v511
    %v517 = vmul.f32 1.0, %v516
    %v518 = vsel %vm119, %v498, %v517
    %v519 = vld [vmem:[#allocation7] sm:$0xff]
    %521 = vrot.lane.b32.xlu0 %v519, 32
    %v522 = vpop.permute.xlu0 %521
    %v524 = vmul.f32 %v518, %v522
    %526 = vrot.lane.b32.xlu0 %v518, 64
    %v527 = vpop.permute.xlu0 %526
    %v529 = vmul.f32 %v518, %v527
    %531 = vrot.lane.b32.xlu0 %v529, 32
    %v532 = vpop.permute.xlu0 %531
    %v534 = vadd.f32 %v524, %v532
    %v535 = vtanh.pop %v534
    %537 = vrot.lane.b32.xlu0 %v535, 64
    %v538 = vpop.permute.xlu0 %537
    %v540 = vmul.f32 %v518, %v538
    %s541 = scalar_lea.vmem [#allocation6], 8
    %v542 = vld [vmem:[%s541] sm:$0xff]
    %544 = vrot.lane.b32.xlu0 %v540, 32
    %v545 = vpop.permute.xlu0 %544
    %548 = vrot.lane.b32.xlu0 %v542, 32
    %v549 = vpop.permute.xlu0 %548
    %v551 = vsel %vm131, %v545, %v549
    %v552 = vsel %vm133, %v551, 0.0
    %s553 = scalar_lea.vmem [#allocation9], 128
    %v554 = vld [vmem:[%s553] sm:$0xff]
    %v555 = vld [vmem:[%s553 + $0x8] sm:$0xff]
    %v556 = vld [vmem:[%s553 + $0x10] sm:$0xff]
    %v557 = vld [vmem:[%s553 + $0x18] sm:$0xff]
    %v558 = vld [vmem:[%s553 + $0x20] sm:$0xff]
    %v559 = vld [vmem:[%s553 + $0x28] sm:$0xff]
    %v560 = vld [vmem:[%s553 + $0x30] sm:$0xff]
    %v561 = vld [vmem:[%s553 + $0x38] sm:$0xff]
    %v562 = vld [vmem:[%s553 + $0x40] sm:$0xff]
    %v563 = vld [vmem:[%s553 + $0x48] sm:$0xff]
    %v564 = vld [vmem:[%s553 + $0x50] sm:$0xff]
    %v565 = vld [vmem:[%s553 + $0x58] sm:$0xff]
    %v566 = vld [vmem:[%s553 + $0x60] sm:$0xff]
    %v567 = vld [vmem:[%s553 + $0x68] sm:$0xff]
    %v568 = vld [vmem:[%s553 + $0x70] sm:$0xff]
    %v569 = vld [vmem:[%s553 + $0x78] sm:$0xff]
    %s570 = scalar_lea.vmem [#allocation10], 1
    %v571 = vld [vmem:[%s570] sm:$0x1]
    %v573 = vperm.slane %v571, 0
    %v575 = vand.u32 %v569, 4294901760
    %576 = vmatpush.msra.mxu0 %v575
    %v577 = vand.u32 %v568, 4294901760
    %578 = vmatpush.msra.mxu0 %v577
    %v579 = vand.u32 %v567, 4294901760
    %580 = vmatpush.msra.mxu0 %v579
    %v581 = vand.u32 %v566, 4294901760
    %582 = vmatpush.msra.mxu0 %v581
    %v583 = vand.u32 %v565, 4294901760
    %584 = vmatpush.msra.mxu0 %v583
    %v585 = vand.u32 %v564, 4294901760
    %586 = vmatpush.msra.mxu0 %v585
    %v587 = vand.u32 %v563, 4294901760
    %588 = vmatpush.msra.mxu0 %v587
    %v589 = vand.u32 %v562, 4294901760
    %590 = vmatpush.msra.mxu0 %v589
    %v591 = vand.u32 %v561, 4294901760
    %592 = vmatpush.msra.mxu0 %v591
    %v593 = vand.u32 %v560, 4294901760
    %594 = vmatpush.msra.mxu0 %v593
    %v595 = vand.u32 %v559, 4294901760
    %596 = vmatpush.msra.mxu0 %v595
    %v597 = vand.u32 %v558, 4294901760
    %598 = vmatpush.msra.mxu0 %v597
    %v599 = vand.u32 %v557, 4294901760
    %600 = vmatpush.msra.mxu0 %v599
    %v601 = vand.u32 %v556, 4294901760
    %602 = vmatpush.msra.mxu0 %v601
    %v603 = vand.u32 %v555, 4294901760
    %604 = vmatpush.msra.mxu0 %v603
    %v605 = vand.u32 %v554, 4294901760
    %606 = vmatpush.msra.mxu0 %v605
    %v607 = vand.u32 %v552, 4294901760
    %v608 = vsub.f32 %v552, %v607
    %v609 = vand.u32 %v608, 4294901760
    %v610 = vsub.f32 %v608, %v609
    %v611 = vand.u32 %v610, 4294901760
    %612 = vmatmul.f32.gmra.mxu0 %v611
    %v613 = vpop.f32.mrf.mxu0
    %v614 = vadd.f32 %v573, %v613
    %615 = vdwg.mxu0
    %v616 = vand.u32 %v569, 4294901760
    %v617 = vsub.f32 %v569, %v616
    %v618 = vand.u32 %v617, 4294901760
    %v619 = vsub.f32 %v617, %v618
    %v620 = vand.u32 %v619, 4294901760
    %621 = vmatpush.msra.mxu0 %v620
    %v622 = vand.u32 %v568, 4294901760
    %v623 = vsub.f32 %v568, %v622
    %v624 = vand.u32 %v623, 4294901760
    %v625 = vsub.f32 %v623, %v624
    %v626 = vand.u32 %v625, 4294901760
    %627 = vmatpush.msra.mxu0 %v626
    %v628 = vand.u32 %v567, 4294901760
    %v629 = vsub.f32 %v567, %v628
    %v630 = vand.u32 %v629, 4294901760
    %v631 = vsub.f32 %v629, %v630
    %v632 = vand.u32 %v631, 4294901760
    %633 = vmatpush.msra.mxu0 %v632
    %v634 = vand.u32 %v566, 4294901760
    %v635 = vsub.f32 %v566, %v634
    %v636 = vand.u32 %v635, 4294901760
    %v637 = vsub.f32 %v635, %v636
    %v638 = vand.u32 %v637, 4294901760
    %639 = vmatpush.msra.mxu0 %v638
    %v640 = vand.u32 %v565, 4294901760
    %v641 = vsub.f32 %v565, %v640
    %v642 = vand.u32 %v641, 4294901760
    %v643 = vsub.f32 %v641, %v642
    %v644 = vand.u32 %v643, 4294901760
    %645 = vmatpush.msra.mxu0 %v644
    %v646 = vand.u32 %v564, 4294901760
    %v647 = vsub.f32 %v564, %v646
    %v648 = vand.u32 %v647, 4294901760
    %v649 = vsub.f32 %v647, %v648
    %v650 = vand.u32 %v649, 4294901760
    %651 = vmatpush.msra.mxu0 %v650
    %v652 = vand.u32 %v563, 4294901760
    %v653 = vsub.f32 %v563, %v652
    %v654 = vand.u32 %v653, 4294901760
    %v655 = vsub.f32 %v653, %v654
    %v656 = vand.u32 %v655, 4294901760
    %657 = vmatpush.msra.mxu0 %v656
    %v658 = vand.u32 %v562, 4294901760
    %v659 = vsub.f32 %v562, %v658
    %v660 = vand.u32 %v659, 4294901760
    %v661 = vsub.f32 %v659, %v660
    %v662 = vand.u32 %v661, 4294901760
    %663 = vmatpush.msra.mxu0 %v662
    %v664 = vand.u32 %v561, 4294901760
    %v665 = vsub.f32 %v561, %v664
    %v666 = vand.u32 %v665, 4294901760
    %v667 = vsub.f32 %v665, %v666
    %v668 = vand.u32 %v667, 4294901760
    %669 = vmatpush.msra.mxu0 %v668
    %v670 = vand.u32 %v560, 4294901760
    %v671 = vsub.f32 %v560, %v670
    %v672 = vand.u32 %v671, 4294901760
    %v673 = vsub.f32 %v671, %v672
    %v674 = vand.u32 %v673, 4294901760
    %675 = vmatpush.msra.mxu0 %v674
    %v676 = vand.u32 %v559, 4294901760
    %v677 = vsub.f32 %v559, %v676
    %v678 = vand.u32 %v677, 4294901760
    %v679 = vsub.f32 %v677, %v678
    %v680 = vand.u32 %v679, 4294901760
    %681 = vmatpush.msra.mxu0 %v680
    %v682 = vand.u32 %v558, 4294901760
    %v683 = vsub.f32 %v558, %v682
    %v684 = vand.u32 %v683, 4294901760
    %v685 = vsub.f32 %v683, %v684
    %v686 = vand.u32 %v685, 4294901760
    %687 = vmatpush.msra.mxu0 %v686
    %v688 = vand.u32 %v557, 4294901760
    %v689 = vsub.f32 %v557, %v688
    %v690 = vand.u32 %v689, 4294901760
    %v691 = vsub.f32 %v689, %v690
    %v692 = vand.u32 %v691, 4294901760
    %693 = vmatpush.msra.mxu0 %v692
    %v694 = vand.u32 %v556, 4294901760
    %v695 = vsub.f32 %v556, %v694
    %v696 = vand.u32 %v695, 4294901760
    %v697 = vsub.f32 %v695, %v696
    %v698 = vand.u32 %v697, 4294901760
    %699 = vmatpush.msra.mxu0 %v698
    %v700 = vand.u32 %v555, 4294901760
    %v701 = vsub.f32 %v555, %v700
    %v702 = vand.u32 %v701, 4294901760
    %v703 = vsub.f32 %v701, %v702
    %v704 = vand.u32 %v703, 4294901760
    %705 = vmatpush.msra.mxu0 %v704
    %v706 = vand.u32 %v554, 4294901760
    %v707 = vsub.f32 %v554, %v706
    %v708 = vand.u32 %v707, 4294901760
    %v709 = vsub.f32 %v707, %v708
    %v710 = vand.u32 %v709, 4294901760
    %711 = vmatpush.msra.mxu0 %v710
    %v712 = vand.u32 %v552, 4294901760
    %713 = vmatmul.f32.gmra.mxu0 %v712
    %v714 = vpop.f32.mrf.mxu0
    %v715 = vadd.f32 %v614, %v714
    %716 = vdwg.mxu0
    %v717 = vand.u32 %v569, 4294901760
    %v718 = vsub.f32 %v569, %v717
    %719 = vmatpush.msra.mxu0 %v718
    %v720 = vand.u32 %v568, 4294901760
    %v721 = vsub.f32 %v568, %v720
    %722 = vmatpush.msra.mxu0 %v721
    %v723 = vand.u32 %v567, 4294901760
    %v724 = vsub.f32 %v567, %v723
    %725 = vmatpush.msra.mxu0 %v724
    %v726 = vand.u32 %v566, 4294901760
    %v727 = vsub.f32 %v566, %v726
    %728 = vmatpush.msra.mxu0 %v727
    %v729 = vand.u32 %v565, 4294901760
    %v730 = vsub.f32 %v565, %v729
    %731 = vmatpush.msra.mxu0 %v730
    %v732 = vand.u32 %v564, 4294901760
    %v733 = vsub.f32 %v564, %v732
    %734 = vmatpush.msra.mxu0 %v733
    %v735 = vand.u32 %v563, 4294901760
    %v736 = vsub.f32 %v563, %v735
    %737 = vmatpush.msra.mxu0 %v736
    %v738 = vand.u32 %v562, 4294901760
    %v739 = vsub.f32 %v562, %v738
    %740 = vmatpush.msra.mxu0 %v739
    %v741 = vand.u32 %v561, 4294901760
    %v742 = vsub.f32 %v561, %v741
    %743 = vmatpush.msra.mxu0 %v742
    %v744 = vand.u32 %v560, 4294901760
    %v745 = vsub.f32 %v560, %v744
    %746 = vmatpush.msra.mxu0 %v745
    %v747 = vand.u32 %v559, 4294901760
    %v748 = vsub.f32 %v559, %v747
    %749 = vmatpush.msra.mxu0 %v748
    %v750 = vand.u32 %v558, 4294901760
    %v751 = vsub.f32 %v558, %v750
    %752 = vmatpush.msra.mxu0 %v751
    %v753 = vand.u32 %v557, 4294901760
    %v754 = vsub.f32 %v557, %v753
    %755 = vmatpush.msra.mxu0 %v754
    %v756 = vand.u32 %v556, 4294901760
    %v757 = vsub.f32 %v556, %v756
    %758 = vmatpush.msra.mxu0 %v757
    %v759 = vand.u32 %v555, 4294901760
    %v760 = vsub.f32 %v555, %v759
    %761 = vmatpush.msra.mxu0 %v760
    %v762 = vand.u32 %v554, 4294901760
    %v763 = vsub.f32 %v554, %v762
    %764 = vmatpush.msra.mxu0 %v763
    %v765 = vand.u32 %v552, 4294901760
    %v766 = vsub.f32 %v552, %v765
    %767 = vmatmul.f32.gmra.mxu0 %v766
    %v768 = vpop.f32.mrf.mxu0
    %v769 = vadd.f32 %v715, %v768
    %770 = vdwg.mxu0
    %v771 = vand.u32 %v569, 4294901760
    %772 = vmatpush.msra.mxu0 %v771
    %v773 = vand.u32 %v568, 4294901760
    %774 = vmatpush.msra.mxu0 %v773
    %v775 = vand.u32 %v567, 4294901760
    %776 = vmatpush.msra.mxu0 %v775
    %v777 = vand.u32 %v566, 4294901760
    %778 = vmatpush.msra.mxu0 %v777
    %v779 = vand.u32 %v565, 4294901760
    %780 = vmatpush.msra.mxu0 %v779
    %v781 = vand.u32 %v564, 4294901760
    %782 = vmatpush.msra.mxu0 %v781
    %v783 = vand.u32 %v563, 4294901760
    %784 = vmatpush.msra.mxu0 %v783
    %v785 = vand.u32 %v562, 4294901760
    %786 = vmatpush.msra.mxu0 %v785
    %v787 = vand.u32 %v561, 4294901760
    %788 = vmatpush.msra.mxu0 %v787
    %v789 = vand.u32 %v560, 4294901760
    %790 = vmatpush.msra.mxu0 %v789
    %v791 = vand.u32 %v559, 4294901760
    %792 = vmatpush.msra.mxu0 %v791
    %v793 = vand.u32 %v558, 4294901760
    %794 = vmatpush.msra.mxu0 %v793
    %v795 = vand.u32 %v557, 4294901760
    %796 = vmatpush.msra.mxu0 %v795
    %v797 = vand.u32 %v556, 4294901760
    %798 = vmatpush.msra.mxu0 %v797
    %v799 = vand.u32 %v555, 4294901760
    %800 = vmatpush.msra.mxu0 %v799
    %v801 = vand.u32 %v554, 4294901760
    %802 = vmatpush.msra.mxu0 %v801
    %v803 = vand.u32 %v552, 4294901760
    %v804 = vsub.f32 %v552, %v803
    %v805 = vand.u32 %v804, 4294901760
    %806 = vmatmul.f32.gmra.mxu0 %v805
    %v807 = vpop.f32.mrf.mxu0
    %v808 = vadd.f32 %v769, %v807
    %809 = vdwg.mxu0
    %v810 = vand.u32 %v569, 4294901760
    %v811 = vsub.f32 %v569, %v810
    %v812 = vand.u32 %v811, 4294901760
    %813 = vmatpush.msra.mxu0 %v812
    %v814 = vand.u32 %v568, 4294901760
    %v815 = vsub.f32 %v568, %v814
    %v816 = vand.u32 %v815, 4294901760
    %817 = vmatpush.msra.mxu0 %v816
    %v818 = vand.u32 %v567, 4294901760
    %v819 = vsub.f32 %v567, %v818
    %v820 = vand.u32 %v819, 4294901760
    %821 = vmatpush.msra.mxu0 %v820
    %v822 = vand.u32 %v566, 4294901760
    %v823 = vsub.f32 %v566, %v822
    %v824 = vand.u32 %v823, 4294901760
    %825 = vmatpush.msra.mxu0 %v824
    %v826 = vand.u32 %v565, 4294901760
    %v827 = vsub.f32 %v565, %v826
    %v828 = vand.u32 %v827, 4294901760
    %829 = vmatpush.msra.mxu0 %v828
    %v830 = vand.u32 %v564, 4294901760
    %v831 = vsub.f32 %v564, %v830
    %v832 = vand.u32 %v831, 4294901760
    %833 = vmatpush.msra.mxu0 %v832
    %v834 = vand.u32 %v563, 4294901760
    %v835 = vsub.f32 %v563, %v834
    %v836 = vand.u32 %v835, 4294901760
    %837 = vmatpush.msra.mxu0 %v836
    %v838 = vand.u32 %v562, 4294901760
    %v839 = vsub.f32 %v562, %v838
    %v840 = vand.u32 %v839, 4294901760
    %841 = vmatpush.msra.mxu0 %v840
    %v842 = vand.u32 %v561, 4294901760
    %v843 = vsub.f32 %v561, %v842
    %v844 = vand.u32 %v843, 4294901760
    %845 = vmatpush.msra.mxu0 %v844
    %v846 = vand.u32 %v560, 4294901760
    %v847 = vsub.f32 %v560, %v846
    %v848 = vand.u32 %v847, 4294901760
    %849 = vmatpush.msra.mxu0 %v848
    %v850 = vand.u32 %v559, 4294901760
    %v851 = vsub.f32 %v559, %v850
    %v852 = vand.u32 %v851, 4294901760
    %853 = vmatpush.msra.mxu0 %v852
    %v854 = vand.u32 %v558, 4294901760
    %v855 = vsub.f32 %v558, %v854
    %v856 = vand.u32 %v855, 4294901760
    %857 = vmatpush.msra.mxu0 %v856
    %v858 = vand.u32 %v557, 4294901760
    %v859 = vsub.f32 %v557, %v858
    %v860 = vand.u32 %v859, 4294901760
    %861 = vmatpush.msra.mxu0 %v860
    %v862 = vand.u32 %v556, 4294901760
    %v863 = vsub.f32 %v556, %v862
    %v864 = vand.u32 %v863, 4294901760
    %865 = vmatpush.msra.mxu0 %v864
    %v866 = vand.u32 %v555, 4294901760
    %v867 = vsub.f32 %v555, %v866
    %v868 = vand.u32 %v867, 4294901760
    %869 = vmatpush.msra.mxu0 %v868
    %v870 = vand.u32 %v554, 4294901760
    %v871 = vsub.f32 %v554, %v870
    %v872 = vand.u32 %v871, 4294901760
    %873 = vmatpush.msra.mxu0 %v872
    %v874 = vand.u32 %v552, 4294901760
    %875 = vmatmul.f32.gmra.mxu0 %v874
    %v876 = vpop.f32.mrf.mxu0
    %v877 = vadd.f32 %v808, %v876
    %878 = vdwg.mxu0
    %v879 = vand.u32 %v569, 4294901760
    %880 = vmatpush.msra.mxu0 %v879
    %v881 = vand.u32 %v568, 4294901760
    %882 = vmatpush.msra.mxu0 %v881
    %v883 = vand.u32 %v567, 4294901760
    %884 = vmatpush.msra.mxu0 %v883
    %v885 = vand.u32 %v566, 4294901760
    %886 = vmatpush.msra.mxu0 %v885
    %v887 = vand.u32 %v565, 4294901760
    %888 = vmatpush.msra.mxu0 %v887
    %v889 = vand.u32 %v564, 4294901760
    %890 = vmatpush.msra.mxu0 %v889
    %v891 = vand.u32 %v563, 4294901760
    %892 = vmatpush.msra.mxu0 %v891
    %v893 = vand.u32 %v562, 4294901760
    %894 = vmatpush.msra.mxu0 %v893
    %v895 = vand.u32 %v561, 4294901760
    %896 = vmatpush.msra.mxu0 %v895
    %v897 = vand.u32 %v560, 4294901760
    %898 = vmatpush.msra.mxu0 %v897
    %v899 = vand.u32 %v559, 4294901760
    %900 = vmatpush.msra.mxu0 %v899
    %v901 = vand.u32 %v558, 4294901760
    %902 = vmatpush.msra.mxu0 %v901
    %v903 = vand.u32 %v557, 4294901760
    %904 = vmatpush.msra.mxu0 %v903
    %v905 = vand.u32 %v556, 4294901760
    %906 = vmatpush.msra.mxu0 %v905
    %v907 = vand.u32 %v555, 4294901760
    %908 = vmatpush.msra.mxu0 %v907
    %v909 = vand.u32 %v554, 4294901760
    %910 = vmatpush.msra.mxu0 %v909
    %v911 = vand.u32 %v552, 4294901760
    %912 = vmatmul.f32.gmra.mxu0 %v911
    %v913 = vpop.f32.mrf.mxu0
    %v914 = vadd.f32 %v877, %v913
    %915 = vdwg.mxu0
    %v916 = vtanh.pop %v914
    %v917 = vxor.u32 %v914, 2147483648
    %v918 = vmul.f32 %v917, 1.442695
    %v919 = vpow.pop %v918
    %v920 = vadd.f32 %v919, 1.0
    %v921 = vrcp.pop %v920
    %v922 = vmul.f32 %v920, %v921
    %v923 = vsub.f32 1.0, %v922
    %v924 = vmul.f32 %v921, %v923
    %v925 = vadd.f32 %v921, %v924
    %vm926 = vweird.f32 %v920
    %vm927 = vweird.f32 %v921
    %vm928 = vmor %vm926, %vm927
    %v929 = vsel %vm928, %v921, %v925
    %v930 = vand.u32 2147483647, %v920
    %vm931 = vcmp.eq.f32.partialorder %v930, 8.507059e+37
    %v932 = vand.u32 %v920, 2147483648
    %v933 = vor.u32 1.1754944e-38, %v932
    %v934 = vsel %vm931, %v933, %v929
    %v935 = vmul.f32 1.0, %v934
    %v936 = vsel %vm119, %v916, %v935
    %s937 = scalar_lea.vmem [#allocation7], 8
    %v938 = vld [vmem:[%s937] sm:$0xff]
    %940 = vrot.lane.b32.xlu0 %v938, 32
    %v941 = vpop.permute.xlu0 %940
    %v943 = vmul.f32 %v936, %v941
    %945 = vrot.lane.b32.xlu0 %v936, 64
    %v946 = vpop.permute.xlu0 %945
    %v948 = vmul.f32 %v936, %v946
    %950 = vrot.lane.b32.xlu0 %v948, 32
    %v951 = vpop.permute.xlu0 %950
    %v953 = vadd.f32 %v943, %v951
    %v954 = vtanh.pop %v953
    %956 = vrot.lane.b32.xlu0 %v954, 64
    %v957 = vpop.permute.xlu0 %956
    %v959 = vmul.f32 %v936, %v957
    %s960 = scalar_lea.vmem [#allocation6], 16
    %v961 = vld [vmem:[%s960] sm:$0xff]
    %963 = vrot.lane.b32.xlu0 %v959, 32
    %v964 = vpop.permute.xlu0 %963
    %967 = vrot.lane.b32.xlu0 %v961, 32
    %v968 = vpop.permute.xlu0 %967
    %v970 = vsel %vm131, %v964, %v968
    %v971 = vsel %vm133, %v970, 0.0
    %s972 = scalar_lea.vmem [#allocation9], 256
    %v973 = vld [vmem:[%s972] sm:$0xff]
    %v974 = vld [vmem:[%s972 + $0x8] sm:$0xff]
    %v975 = vld [vmem:[%s972 + $0x10] sm:$0xff]
    %v976 = vld [vmem:[%s972 + $0x18] sm:$0xff]
    %v977 = vld [vmem:[%s972 + $0x20] sm:$0xff]
    %v978 = vld [vmem:[%s972 + $0x28] sm:$0xff]
    %v979 = vld [vmem:[%s972 + $0x30] sm:$0xff]
    %v980 = vld [vmem:[%s972 + $0x38] sm:$0xff]
    %v981 = vld [vmem:[%s972 + $0x40] sm:$0xff]
    %v982 = vld [vmem:[%s972 + $0x48] sm:$0xff]
    %v983 = vld [vmem:[%s972 + $0x50] sm:$0xff]
    %v984 = vld [vmem:[%s972 + $0x58] sm:$0xff]
    %v985 = vld [vmem:[%s972 + $0x60] sm:$0xff]
    %v986 = vld [vmem:[%s972 + $0x68] sm:$0xff]
    %v987 = vld [vmem:[%s972 + $0x70] sm:$0xff]
    %v988 = vld [vmem:[%s972 + $0x78] sm:$0xff]
    %s989 = scalar_lea.vmem [#allocation10], 2
    %v990 = vld [vmem:[%s989] sm:$0x1]
    %v992 = vperm.slane %v990, 0
    %v994 = vand.u32 %v988, 4294901760
    %995 = vmatpush.msra.mxu0 %v994
    %v996 = vand.u32 %v987, 4294901760
    %997 = vmatpush.msra.mxu0 %v996
    %v998 = vand.u32 %v986, 4294901760
    %999 = vmatpush.msra.mxu0 %v998
    %v1000 = vand.u32 %v985, 4294901760
    %1001 = vmatpush.msra.mxu0 %v1000
    %v1002 = vand.u32 %v984, 4294901760
    %1003 = vmatpush.msra.mxu0 %v1002
    %v1004 = vand.u32 %v983, 4294901760
    %1005 = vmatpush.msra.mxu0 %v1004
    %v1006 = vand.u32 %v982, 4294901760
    %1007 = vmatpush.msra.mxu0 %v1006
    %v1008 = vand.u32 %v981, 4294901760
    %1009 = vmatpush.msra.mxu0 %v1008
    %v1010 = vand.u32 %v980, 4294901760
    %1011 = vmatpush.msra.mxu0 %v1010
    %v1012 = vand.u32 %v979, 4294901760
    %1013 = vmatpush.msra.mxu0 %v1012
    %v1014 = vand.u32 %v978, 4294901760
    %1015 = vmatpush.msra.mxu0 %v1014
    %v1016 = vand.u32 %v977, 4294901760
    %1017 = vmatpush.msra.mxu0 %v1016
    %v1018 = vand.u32 %v976, 4294901760
    %1019 = vmatpush.msra.mxu0 %v1018
    %v1020 = vand.u32 %v975, 4294901760
    %1021 = vmatpush.msra.mxu0 %v1020
    %v1022 = vand.u32 %v974, 4294901760
    %1023 = vmatpush.msra.mxu0 %v1022
    %v1024 = vand.u32 %v973, 4294901760
    %1025 = vmatpush.msra.mxu0 %v1024
    %v1026 = vand.u32 %v971, 4294901760
    %v1027 = vsub.f32 %v971, %v1026
    %v1028 = vand.u32 %v1027, 4294901760
    %v1029 = vsub.f32 %v1027, %v1028
    %v1030 = vand.u32 %v1029, 4294901760
    %1031 = vmatmul.f32.gmra.mxu0 %v1030
    %v1032 = vpop.f32.mrf.mxu0
    %v1033 = vadd.f32 %v992, %v1032
    %1034 = vdwg.mxu0
    %v1035 = vand.u32 %v988, 4294901760
    %v1036 = vsub.f32 %v988, %v1035
    %v1037 = vand.u32 %v1036, 4294901760
    %v1038 = vsub.f32 %v1036, %v1037
    %v1039 = vand.u32 %v1038, 4294901760
    %1040 = vmatpush.msra.mxu0 %v1039
    %v1041 = vand.u32 %v987, 4294901760
    %v1042 = vsub.f32 %v987, %v1041
    %v1043 = vand.u32 %v1042, 4294901760
    %v1044 = vsub.f32 %v1042, %v1043
    %v1045 = vand.u32 %v1044, 4294901760
    %1046 = vmatpush.msra.mxu0 %v1045
    %v1047 = vand.u32 %v986, 4294901760
    %v1048 = vsub.f32 %v986, %v1047
    %v1049 = vand.u32 %v1048, 4294901760
    %v1050 = vsub.f32 %v1048, %v1049
    %v1051 = vand.u32 %v1050, 4294901760
    %1052 = vmatpush.msra.mxu0 %v1051
    %v1053 = vand.u32 %v985, 4294901760
    %v1054 = vsub.f32 %v985, %v1053
    %v1055 = vand.u32 %v1054, 4294901760
    %v1056 = vsub.f32 %v1054, %v1055
    %v1057 = vand.u32 %v1056, 4294901760
    %1058 = vmatpush.msra.mxu0 %v1057
    %v1059 = vand.u32 %v984, 4294901760
    %v1060 = vsub.f32 %v984, %v1059
    %v1061 = vand.u32 %v1060, 4294901760
    %v1062 = vsub.f32 %v1060, %v1061
    %v1063 = vand.u32 %v1062, 4294901760
    %1064 = vmatpush.msra.mxu0 %v1063
    %v1065 = vand.u32 %v983, 4294901760
    %v1066 = vsub.f32 %v983, %v1065
    %v1067 = vand.u32 %v1066, 4294901760
    %v1068 = vsub.f32 %v1066, %v1067
    %v1069 = vand.u32 %v1068, 4294901760
    %1070 = vmatpush.msra.mxu0 %v1069
    %v1071 = vand.u32 %v982, 4294901760
    %v1072 = vsub.f32 %v982, %v1071
    %v1073 = vand.u32 %v1072, 4294901760
    %v1074 = vsub.f32 %v1072, %v1073
    %v1075 = vand.u32 %v1074, 4294901760
    %1076 = vmatpush.msra.mxu0 %v1075
    %v1077 = vand.u32 %v981, 4294901760
    %v1078 = vsub.f32 %v981, %v1077
    %v1079 = vand.u32 %v1078, 4294901760
    %v1080 = vsub.f32 %v1078, %v1079
    %v1081 = vand.u32 %v1080, 4294901760
    %1082 = vmatpush.msra.mxu0 %v1081
    %v1083 = vand.u32 %v980, 4294901760
    %v1084 = vsub.f32 %v980, %v1083
    %v1085 = vand.u32 %v1084, 4294901760
    %v1086 = vsub.f32 %v1084, %v1085
    %v1087 = vand.u32 %v1086, 4294901760
    %1088 = vmatpush.msra.mxu0 %v1087
    %v1089 = vand.u32 %v979, 4294901760
    %v1090 = vsub.f32 %v979, %v1089
    %v1091 = vand.u32 %v1090, 4294901760
    %v1092 = vsub.f32 %v1090, %v1091
    %v1093 = vand.u32 %v1092, 4294901760
    %1094 = vmatpush.msra.mxu0 %v1093
    %v1095 = vand.u32 %v978, 4294901760
    %v1096 = vsub.f32 %v978, %v1095
    %v1097 = vand.u32 %v1096, 4294901760
    %v1098 = vsub.f32 %v1096, %v1097
    %v1099 = vand.u32 %v1098, 4294901760
    %1100 = vmatpush.msra.mxu0 %v1099
    %v1101 = vand.u32 %v977, 4294901760
    %v1102 = vsub.f32 %v977, %v1101
    %v1103 = vand.u32 %v1102, 4294901760
    %v1104 = vsub.f32 %v1102, %v1103
    %v1105 = vand.u32 %v1104, 4294901760
    %1106 = vmatpush.msra.mxu0 %v1105
    %v1107 = vand.u32 %v976, 4294901760
    %v1108 = vsub.f32 %v976, %v1107
    %v1109 = vand.u32 %v1108, 4294901760
    %v1110 = vsub.f32 %v1108, %v1109
    %v1111 = vand.u32 %v1110, 4294901760
    %1112 = vmatpush.msra.mxu0 %v1111
    %v1113 = vand.u32 %v975, 4294901760
    %v1114 = vsub.f32 %v975, %v1113
    %v1115 = vand.u32 %v1114, 4294901760
    %v1116 = vsub.f32 %v1114, %v1115
    %v1117 = vand.u32 %v1116, 4294901760
    %1118 = vmatpush.msra.mxu0 %v1117
    %v1119 = vand.u32 %v974, 4294901760
    %v1120 = vsub.f32 %v974, %v1119
    %v1121 = vand.u32 %v1120, 4294901760
    %v1122 = vsub.f32 %v1120, %v1121
    %v1123 = vand.u32 %v1122, 4294901760
    %1124 = vmatpush.msra.mxu0 %v1123
    %v1125 = vand.u32 %v973, 4294901760
    %v1126 = vsub.f32 %v973, %v1125
    %v1127 = vand.u32 %v1126, 4294901760
    %v1128 = vsub.f32 %v1126, %v1127
    %v1129 = vand.u32 %v1128, 4294901760
    %1130 = vmatpush.msra.mxu0 %v1129
    %v1131 = vand.u32 %v971, 4294901760
    %1132 = vmatmul.f32.gmra.mxu0 %v1131
    %v1133 = vpop.f32.mrf.mxu0
    %v1134 = vadd.f32 %v1033, %v1133
    %1135 = vdwg.mxu0
    %v1136 = vand.u32 %v988, 4294901760
    %v1137 = vsub.f32 %v988, %v1136
    %1138 = vmatpush.msra.mxu0 %v1137
    %v1139 = vand.u32 %v987, 4294901760
    %v1140 = vsub.f32 %v987, %v1139
    %1141 = vmatpush.msra.mxu0 %v1140
    %v1142 = vand.u32 %v986, 4294901760
    %v1143 = vsub.f32 %v986, %v1142
    %1144 = vmatpush.msra.mxu0 %v1143
    %v1145 = vand.u32 %v985, 4294901760
    %v1146 = vsub.f32 %v985, %v1145
    %1147 = vmatpush.msra.mxu0 %v1146
    %v1148 = vand.u32 %v984, 4294901760
    %v1149 = vsub.f32 %v984, %v1148
    %1150 = vmatpush.msra.mxu0 %v1149
    %v1151 = vand.u32 %v983, 4294901760
    %v1152 = vsub.f32 %v983, %v1151
    %1153 = vmatpush.msra.mxu0 %v1152
    %v1154 = vand.u32 %v982, 4294901760
    %v1155 = vsub.f32 %v982, %v1154
    %1156 = vmatpush.msra.mxu0 %v1155
    %v1157 = vand.u32 %v981, 4294901760
    %v1158 = vsub.f32 %v981, %v1157
    %1159 = vmatpush.msra.mxu0 %v1158
    %v1160 = vand.u32 %v980, 4294901760
    %v1161 = vsub.f32 %v980, %v1160
    %1162 = vmatpush.msra.mxu0 %v1161
    %v1163 = vand.u32 %v979, 4294901760
    %v1164 = vsub.f32 %v979, %v1163
    %1165 = vmatpush.msra.mxu0 %v1164
    %v1166 = vand.u32 %v978, 4294901760
    %v1167 = vsub.f32 %v978, %v1166
    %1168 = vmatpush.msra.mxu0 %v1167
    %v1169 = vand.u32 %v977, 4294901760
    %v1170 = vsub.f32 %v977, %v1169
    %1171 = vmatpush.msra.mxu0 %v1170
    %v1172 = vand.u32 %v976, 4294901760
    %v1173 = vsub.f32 %v976, %v1172
    %1174 = vmatpush.msra.mxu0 %v1173
    %v1175 = vand.u32 %v975, 4294901760
    %v1176 = vsub.f32 %v975, %v1175
    %1177 = vmatpush.msra.mxu0 %v1176
    %v1178 = vand.u32 %v974, 4294901760
    %v1179 = vsub.f32 %v974, %v1178
    %1180 = vmatpush.msra.mxu0 %v1179
    %v1181 = vand.u32 %v973, 4294901760
    %v1182 = vsub.f32 %v973, %v1181
    %1183 = vmatpush.msra.mxu0 %v1182
    %v1184 = vand.u32 %v971, 4294901760
    %v1185 = vsub.f32 %v971, %v1184
    %1186 = vmatmul.f32.gmra.mxu0 %v1185
    %v1187 = vpop.f32.mrf.mxu0
    %v1188 = vadd.f32 %v1134, %v1187
    %1189 = vdwg.mxu0
    %v1190 = vand.u32 %v988, 4294901760
    %1191 = vmatpush.msra.mxu0 %v1190
    %v1192 = vand.u32 %v987, 4294901760
    %1193 = vmatpush.msra.mxu0 %v1192
    %v1194 = vand.u32 %v986, 4294901760
    %1195 = vmatpush.msra.mxu0 %v1194
    %v1196 = vand.u32 %v985, 4294901760
    %1197 = vmatpush.msra.mxu0 %v1196
    %v1198 = vand.u32 %v984, 4294901760
    %1199 = vmatpush.msra.mxu0 %v1198
    %v1200 = vand.u32 %v983, 4294901760
    %1201 = vmatpush.msra.mxu0 %v1200
    %v1202 = vand.u32 %v982, 4294901760
    %1203 = vmatpush.msra.mxu0 %v1202
    %v1204 = vand.u32 %v981, 4294901760
    %1205 = vmatpush.msra.mxu0 %v1204
    %v1206 = vand.u32 %v980, 4294901760
    %1207 = vmatpush.msra.mxu0 %v1206
    %v1208 = vand.u32 %v979, 4294901760
    %1209 = vmatpush.msra.mxu0 %v1208
    %v1210 = vand.u32 %v978, 4294901760
    %1211 = vmatpush.msra.mxu0 %v1210
    %v1212 = vand.u32 %v977, 4294901760
    %1213 = vmatpush.msra.mxu0 %v1212
    %v1214 = vand.u32 %v976, 4294901760
    %1215 = vmatpush.msra.mxu0 %v1214
    %v1216 = vand.u32 %v975, 4294901760
    %1217 = vmatpush.msra.mxu0 %v1216
    %v1218 = vand.u32 %v974, 4294901760
    %1219 = vmatpush.msra.mxu0 %v1218
    %v1220 = vand.u32 %v973, 4294901760
    %1221 = vmatpush.msra.mxu0 %v1220
    %v1222 = vand.u32 %v971, 4294901760
    %v1223 = vsub.f32 %v971, %v1222
    %v1224 = vand.u32 %v1223, 4294901760
    %1225 = vmatmul.f32.gmra.mxu0 %v1224
    %v1226 = vpop.f32.mrf.mxu0
    %v1227 = vadd.f32 %v1188, %v1226
    %1228 = vdwg.mxu0
    %v1229 = vand.u32 %v988, 4294901760
    %v1230 = vsub.f32 %v988, %v1229
    %v1231 = vand.u32 %v1230, 4294901760
    %1232 = vmatpush.msra.mxu0 %v1231
    %v1233 = vand.u32 %v987, 4294901760
    %v1234 = vsub.f32 %v987, %v1233
    %v1235 = vand.u32 %v1234, 4294901760
    %1236 = vmatpush.msra.mxu0 %v1235
    %v1237 = vand.u32 %v986, 4294901760
    %v1238 = vsub.f32 %v986, %v1237
    %v1239 = vand.u32 %v1238, 4294901760
    %1240 = vmatpush.msra.mxu0 %v1239
    %v1241 = vand.u32 %v985, 4294901760
    %v1242 = vsub.f32 %v985, %v1241
    %v1243 = vand.u32 %v1242, 4294901760
    %1244 = vmatpush.msra.mxu0 %v1243
    %v1245 = vand.u32 %v984, 4294901760
    %v1246 = vsub.f32 %v984, %v1245
    %v1247 = vand.u32 %v1246, 4294901760
    %1248 = vmatpush.msra.mxu0 %v1247
    %v1249 = vand.u32 %v983, 4294901760
    %v1250 = vsub.f32 %v983, %v1249
    %v1251 = vand.u32 %v1250, 4294901760
    %1252 = vmatpush.msra.mxu0 %v1251
    %v1253 = vand.u32 %v982, 4294901760
    %v1254 = vsub.f32 %v982, %v1253
    %v1255 = vand.u32 %v1254, 4294901760
    %1256 = vmatpush.msra.mxu0 %v1255
    %v1257 = vand.u32 %v981, 4294901760
    %v1258 = vsub.f32 %v981, %v1257
    %v1259 = vand.u32 %v1258, 4294901760
    %1260 = vmatpush.msra.mxu0 %v1259
    %v1261 = vand.u32 %v980, 4294901760
    %v1262 = vsub.f32 %v980, %v1261
    %v1263 = vand.u32 %v1262, 4294901760
    %1264 = vmatpush.msra.mxu0 %v1263
    %v1265 = vand.u32 %v979, 4294901760
    %v1266 = vsub.f32 %v979, %v1265
    %v1267 = vand.u32 %v1266, 4294901760
    %1268 = vmatpush.msra.mxu0 %v1267
    %v1269 = vand.u32 %v978, 4294901760
    %v1270 = vsub.f32 %v978, %v1269
    %v1271 = vand.u32 %v1270, 4294901760
    %1272 = vmatpush.msra.mxu0 %v1271
    %v1273 = vand.u32 %v977, 4294901760
    %v1274 = vsub.f32 %v977, %v1273
    %v1275 = vand.u32 %v1274, 4294901760
    %1276 = vmatpush.msra.mxu0 %v1275
    %v1277 = vand.u32 %v976, 4294901760
    %v1278 = vsub.f32 %v976, %v1277
    %v1279 = vand.u32 %v1278, 4294901760
    %1280 = vmatpush.msra.mxu0 %v1279
    %v1281 = vand.u32 %v975, 4294901760
    %v1282 = vsub.f32 %v975, %v1281
    %v1283 = vand.u32 %v1282, 4294901760
    %1284 = vmatpush.msra.mxu0 %v1283
    %v1285 = vand.u32 %v974, 4294901760
    %v1286 = vsub.f32 %v974, %v1285
    %v1287 = vand.u32 %v1286, 4294901760
    %1288 = vmatpush.msra.mxu0 %v1287
    %v1289 = vand.u32 %v973, 4294901760
    %v1290 = vsub.f32 %v973, %v1289
    %v1291 = vand.u32 %v1290, 4294901760
    %1292 = vmatpush.msra.mxu0 %v1291
    %v1293 = vand.u32 %v971, 4294901760
    %1294 = vmatmul.f32.gmra.mxu0 %v1293
    %v1295 = vpop.f32.mrf.mxu0
    %v1296 = vadd.f32 %v1227, %v1295
    %1297 = vdwg.mxu0
    %v1298 = vand.u32 %v988, 4294901760
    %1299 = vmatpush.msra.mxu0 %v1298
    %v1300 = vand.u32 %v987, 4294901760
    %1301 = vmatpush.msra.mxu0 %v1300
    %v1302 = vand.u32 %v986, 4294901760
    %1303 = vmatpush.msra.mxu0 %v1302
    %v1304 = vand.u32 %v985, 4294901760
    %1305 = vmatpush.msra.mxu0 %v1304
    %v1306 = vand.u32 %v984, 4294901760
    %1307 = vmatpush.msra.mxu0 %v1306
    %v1308 = vand.u32 %v983, 4294901760
    %1309 = vmatpush.msra.mxu0 %v1308
    %v1310 = vand.u32 %v982, 4294901760
    %1311 = vmatpush.msra.mxu0 %v1310
    %v1312 = vand.u32 %v981, 4294901760
    %1313 = vmatpush.msra.mxu0 %v1312
    %v1314 = vand.u32 %v980, 4294901760
    %1315 = vmatpush.msra.mxu0 %v1314
    %v1316 = vand.u32 %v979, 4294901760
    %1317 = vmatpush.msra.mxu0 %v1316
    %v1318 = vand.u32 %v978, 4294901760
    %1319 = vmatpush.msra.mxu0 %v1318
    %v1320 = vand.u32 %v977, 4294901760
    %1321 = vmatpush.msra.mxu0 %v1320
    %v1322 = vand.u32 %v976, 4294901760
    %1323 = vmatpush.msra.mxu0 %v1322
    %v1324 = vand.u32 %v975, 4294901760
    %1325 = vmatpush.msra.mxu0 %v1324
    %v1326 = vand.u32 %v974, 4294901760
    %1327 = vmatpush.msra.mxu0 %v1326
    %v1328 = vand.u32 %v973, 4294901760
    %1329 = vmatpush.msra.mxu0 %v1328
    %v1330 = vand.u32 %v971, 4294901760
    %1331 = vmatmul.f32.gmra.mxu0 %v1330
    %v1332 = vpop.f32.mrf.mxu0
    %v1333 = vadd.f32 %v1296, %v1332
    %1334 = vdwg.mxu0
    %v1335 = vtanh.pop %v1333
    %v1336 = vxor.u32 %v1333, 2147483648
    %v1337 = vmul.f32 %v1336, 1.442695
    %v1338 = vpow.pop %v1337
    %v1339 = vadd.f32 %v1338, 1.0
    %v1340 = vrcp.pop %v1339
    %v1341 = vmul.f32 %v1339, %v1340
    %v1342 = vsub.f32 1.0, %v1341
    %v1343 = vmul.f32 %v1340, %v1342
    %v1344 = vadd.f32 %v1340, %v1343
    %vm1345 = vweird.f32 %v1339
    %vm1346 = vweird.f32 %v1340
    %vm1347 = vmor %vm1345, %vm1346
    %v1348 = vsel %vm1347, %v1340, %v1344
    %v1349 = vand.u32 2147483647, %v1339
    %vm1350 = vcmp.eq.f32.partialorder %v1349, 8.507059e+37
    %v1351 = vand.u32 %v1339, 2147483648
    %v1352 = vor.u32 1.1754944e-38, %v1351
    %v1353 = vsel %vm1350, %v1352, %v1348
    %v1354 = vmul.f32 1.0, %v1353
    %v1355 = vsel %vm119, %v1335, %v1354
    %s1356 = scalar_lea.vmem [#allocation7], 16
    %v1357 = vld [vmem:[%s1356] sm:$0xff]
    %1359 = vrot.lane.b32.xlu0 %v1357, 32
    %v1360 = vpop.permute.xlu0 %1359
    %v1362 = vmul.f32 %v1355, %v1360
    %1364 = vrot.lane.b32.xlu0 %v1355, 64
    %v1365 = vpop.permute.xlu0 %1364
    %v1367 = vmul.f32 %v1355, %v1365
    %1369 = vrot.lane.b32.xlu0 %v1367, 32
    %v1370 = vpop.permute.xlu0 %1369
    %v1372 = vadd.f32 %v1362, %v1370
    %v1373 = vtanh.pop %v1372
    %1375 = vrot.lane.b32.xlu0 %v1373, 64
    %v1376 = vpop.permute.xlu0 %1375
    %v1378 = vmul.f32 %v1355, %v1376
    %s1379 = scalar_lea.vmem [#allocation6], 24
    %v1380 = vld [vmem:[%s1379] sm:$0xff]
    %1382 = vrot.lane.b32.xlu0 %v1378, 32
    %v1383 = vpop.permute.xlu0 %1382
    %1386 = vrot.lane.b32.xlu0 %v1380, 32
    %v1387 = vpop.permute.xlu0 %1386
    %v1389 = vsel %vm131, %v1383, %v1387
    %v1390 = vsel %vm133, %v1389, 0.0
    %s1391 = scalar_lea.vmem [#allocation9], 384
    %v1392 = vld [vmem:[%s1391] sm:$0xff]
    %v1393 = vld [vmem:[%s1391 + $0x8] sm:$0xff]
    %v1394 = vld [vmem:[%s1391 + $0x10] sm:$0xff]
    %v1395 = vld [vmem:[%s1391 + $0x18] sm:$0xff]
    %v1396 = vld [vmem:[%s1391 + $0x20] sm:$0xff]
    %v1397 = vld [vmem:[%s1391 + $0x28] sm:$0xff]
    %v1398 = vld [vmem:[%s1391 + $0x30] sm:$0xff]
    %v1399 = vld [vmem:[%s1391 + $0x38] sm:$0xff]
    %v1400 = vld [vmem:[%s1391 + $0x40] sm:$0xff]
    %v1401 = vld [vmem:[%s1391 + $0x48] sm:$0xff]
    %v1402 = vld [vmem:[%s1391 + $0x50] sm:$0xff]
    %v1403 = vld [vmem:[%s1391 + $0x58] sm:$0xff]
    %v1404 = vld [vmem:[%s1391 + $0x60] sm:$0xff]
    %v1405 = vld [vmem:[%s1391 + $0x68] sm:$0xff]
    %v1406 = vld [vmem:[%s1391 + $0x70] sm:$0xff]
    %v1407 = vld [vmem:[%s1391 + $0x78] sm:$0xff]
    %s1408 = scalar_lea.vmem [#allocation10], 3
    %v1409 = vld [vmem:[%s1408] sm:$0x1]
    %v1411 = vperm.slane %v1409, 0
    %v1413 = vand.u32 %v1407, 4294901760
    %1414 = vmatpush.msra.mxu0 %v1413
    %v1415 = vand.u32 %v1406, 4294901760
    %1416 = vmatpush.msra.mxu0 %v1415
    %v1417 = vand.u32 %v1405, 4294901760
    %1418 = vmatpush.msra.mxu0 %v1417
    %v1419 = vand.u32 %v1404, 4294901760
    %1420 = vmatpush.msra.mxu0 %v1419
    %v1421 = vand.u32 %v1403, 4294901760
    %1422 = vmatpush.msra.mxu0 %v1421
    %v1423 = vand.u32 %v1402, 4294901760
    %1424 = vmatpush.msra.mxu0 %v1423
    %v1425 = vand.u32 %v1401, 4294901760
    %1426 = vmatpush.msra.mxu0 %v1425
    %v1427 = vand.u32 %v1400, 4294901760
    %1428 = vmatpush.msra.mxu0 %v1427
    %v1429 = vand.u32 %v1399, 4294901760
    %1430 = vmatpush.msra.mxu0 %v1429
    %v1431 = vand.u32 %v1398, 4294901760
    %1432 = vmatpush.msra.mxu0 %v1431
    %v1433 = vand.u32 %v1397, 4294901760
    %1434 = vmatpush.msra.mxu0 %v1433
    %v1435 = vand.u32 %v1396, 4294901760
    %1436 = vmatpush.msra.mxu0 %v1435
    %v1437 = vand.u32 %v1395, 4294901760
    %1438 = vmatpush.msra.mxu0 %v1437
    %v1439 = vand.u32 %v1394, 4294901760
    %1440 = vmatpush.msra.mxu0 %v1439
    %v1441 = vand.u32 %v1393, 4294901760
    %1442 = vmatpush.msra.mxu0 %v1441
    %v1443 = vand.u32 %v1392, 4294901760
    %1444 = vmatpush.msra.mxu0 %v1443
    %v1445 = vand.u32 %v1390, 4294901760
    %v1446 = vsub.f32 %v1390, %v1445
    %v1447 = vand.u32 %v1446, 4294901760
    %v1448 = vsub.f32 %v1446, %v1447
    %v1449 = vand.u32 %v1448, 4294901760
    %1450 = vmatmul.f32.gmra.mxu0 %v1449
    %v1451 = vpop.f32.mrf.mxu0
    %v1452 = vadd.f32 %v1411, %v1451
    %1453 = vdwg.mxu0
    %v1454 = vand.u32 %v1407, 4294901760
    %v1455 = vsub.f32 %v1407, %v1454
    %v1456 = vand.u32 %v1455, 4294901760
    %v1457 = vsub.f32 %v1455, %v1456
    %v1458 = vand.u32 %v1457, 4294901760
    %1459 = vmatpush.msra.mxu0 %v1458
    %v1460 = vand.u32 %v1406, 4294901760
    %v1461 = vsub.f32 %v1406, %v1460
    %v1462 = vand.u32 %v1461, 4294901760
    %v1463 = vsub.f32 %v1461, %v1462
    %v1464 = vand.u32 %v1463, 4294901760
    %1465 = vmatpush.msra.mxu0 %v1464
    %v1466 = vand.u32 %v1405, 4294901760
    %v1467 = vsub.f32 %v1405, %v1466
    %v1468 = vand.u32 %v1467, 4294901760
    %v1469 = vsub.f32 %v1467, %v1468
    %v1470 = vand.u32 %v1469, 4294901760
    %1471 = vmatpush.msra.mxu0 %v1470
    %v1472 = vand.u32 %v1404, 4294901760
    %v1473 = vsub.f32 %v1404, %v1472
    %v1474 = vand.u32 %v1473, 4294901760
    %v1475 = vsub.f32 %v1473, %v1474
    %v1476 = vand.u32 %v1475, 4294901760
    %1477 = vmatpush.msra.mxu0 %v1476
    %v1478 = vand.u32 %v1403, 4294901760
    %v1479 = vsub.f32 %v1403, %v1478
    %v1480 = vand.u32 %v1479, 4294901760
    %v1481 = vsub.f32 %v1479, %v1480
    %v1482 = vand.u32 %v1481, 4294901760
    %1483 = vmatpush.msra.mxu0 %v1482
    %v1484 = vand.u32 %v1402, 4294901760
    %v1485 = vsub.f32 %v1402, %v1484
    %v1486 = vand.u32 %v1485, 4294901760
    %v1487 = vsub.f32 %v1485, %v1486
    %v1488 = vand.u32 %v1487, 4294901760
    %1489 = vmatpush.msra.mxu0 %v1488
    %v1490 = vand.u32 %v1401, 4294901760
    %v1491 = vsub.f32 %v1401, %v1490
    %v1492 = vand.u32 %v1491, 4294901760
    %v1493 = vsub.f32 %v1491, %v1492
    %v1494 = vand.u32 %v1493, 4294901760
    %1495 = vmatpush.msra.mxu0 %v1494
    %v1496 = vand.u32 %v1400, 4294901760
    %v1497 = vsub.f32 %v1400, %v1496
    %v1498 = vand.u32 %v1497, 4294901760
    %v1499 = vsub.f32 %v1497, %v1498
    %v1500 = vand.u32 %v1499, 4294901760
    %1501 = vmatpush.msra.mxu0 %v1500
    %v1502 = vand.u32 %v1399, 4294901760
    %v1503 = vsub.f32 %v1399, %v1502
    %v1504 = vand.u32 %v1503, 4294901760
    %v1505 = vsub.f32 %v1503, %v1504
    %v1506 = vand.u32 %v1505, 4294901760
    %1507 = vmatpush.msra.mxu0 %v1506
    %v1508 = vand.u32 %v1398, 4294901760
    %v1509 = vsub.f32 %v1398, %v1508
    %v1510 = vand.u32 %v1509, 4294901760
    %v1511 = vsub.f32 %v1509, %v1510
    %v1512 = vand.u32 %v1511, 4294901760
    %1513 = vmatpush.msra.mxu0 %v1512
    %v1514 = vand.u32 %v1397, 4294901760
    %v1515 = vsub.f32 %v1397, %v1514
    %v1516 = vand.u32 %v1515, 4294901760
    %v1517 = vsub.f32 %v1515, %v1516
    %v1518 = vand.u32 %v1517, 4294901760
    %1519 = vmatpush.msra.mxu0 %v1518
    %v1520 = vand.u32 %v1396, 4294901760
    %v1521 = vsub.f32 %v1396, %v1520
    %v1522 = vand.u32 %v1521, 4294901760
    %v1523 = vsub.f32 %v1521, %v1522
    %v1524 = vand.u32 %v1523, 4294901760
    %1525 = vmatpush.msra.mxu0 %v1524
    %v1526 = vand.u32 %v1395, 4294901760
    %v1527 = vsub.f32 %v1395, %v1526
    %v1528 = vand.u32 %v1527, 4294901760
    %v1529 = vsub.f32 %v1527, %v1528
    %v1530 = vand.u32 %v1529, 4294901760
    %1531 = vmatpush.msra.mxu0 %v1530
    %v1532 = vand.u32 %v1394, 4294901760
    %v1533 = vsub.f32 %v1394, %v1532
    %v1534 = vand.u32 %v1533, 4294901760
    %v1535 = vsub.f32 %v1533, %v1534
    %v1536 = vand.u32 %v1535, 4294901760
    %1537 = vmatpush.msra.mxu0 %v1536
    %v1538 = vand.u32 %v1393, 4294901760
    %v1539 = vsub.f32 %v1393, %v1538
    %v1540 = vand.u32 %v1539, 4294901760
    %v1541 = vsub.f32 %v1539, %v1540
    %v1542 = vand.u32 %v1541, 4294901760
    %1543 = vmatpush.msra.mxu0 %v1542
    %v1544 = vand.u32 %v1392, 4294901760
    %v1545 = vsub.f32 %v1392, %v1544
    %v1546 = vand.u32 %v1545, 4294901760
    %v1547 = vsub.f32 %v1545, %v1546
    %v1548 = vand.u32 %v1547, 4294901760
    %1549 = vmatpush.msra.mxu0 %v1548
    %v1550 = vand.u32 %v1390, 4294901760
    %1551 = vmatmul.f32.gmra.mxu0 %v1550
    %v1552 = vpop.f32.mrf.mxu0
    %v1553 = vadd.f32 %v1452, %v1552
    %1554 = vdwg.mxu0
    %v1555 = vand.u32 %v1407, 4294901760
    %v1556 = vsub.f32 %v1407, %v1555
    %1557 = vmatpush.msra.mxu0 %v1556
    %v1558 = vand.u32 %v1406, 4294901760
    %v1559 = vsub.f32 %v1406, %v1558
    %1560 = vmatpush.msra.mxu0 %v1559
    %v1561 = vand.u32 %v1405, 4294901760
    %v1562 = vsub.f32 %v1405, %v1561
    %1563 = vmatpush.msra.mxu0 %v1562
    %v1564 = vand.u32 %v1404, 4294901760
    %v1565 = vsub.f32 %v1404, %v1564
    %1566 = vmatpush.msra.mxu0 %v1565
    %v1567 = vand.u32 %v1403, 4294901760
    %v1568 = vsub.f32 %v1403, %v1567
    %1569 = vmatpush.msra.mxu0 %v1568
    %v1570 = vand.u32 %v1402, 4294901760
    %v1571 = vsub.f32 %v1402, %v1570
    %1572 = vmatpush.msra.mxu0 %v1571
    %v1573 = vand.u32 %v1401, 4294901760
    %v1574 = vsub.f32 %v1401, %v1573
    %1575 = vmatpush.msra.mxu0 %v1574
    %v1576 = vand.u32 %v1400, 4294901760
    %v1577 = vsub.f32 %v1400, %v1576
    %1578 = vmatpush.msra.mxu0 %v1577
    %v1579 = vand.u32 %v1399, 4294901760
    %v1580 = vsub.f32 %v1399, %v1579
    %1581 = vmatpush.msra.mxu0 %v1580
    %v1582 = vand.u32 %v1398, 4294901760
    %v1583 = vsub.f32 %v1398, %v1582
    %1584 = vmatpush.msra.mxu0 %v1583
    %v1585 = vand.u32 %v1397, 4294901760
    %v1586 = vsub.f32 %v1397, %v1585
    %1587 = vmatpush.msra.mxu0 %v1586
    %v1588 = vand.u32 %v1396, 4294901760
    %v1589 = vsub.f32 %v1396, %v1588
    %1590 = vmatpush.msra.mxu0 %v1589
    %v1591 = vand.u32 %v1395, 4294901760
    %v1592 = vsub.f32 %v1395, %v1591
    %1593 = vmatpush.msra.mxu0 %v1592
    %v1594 = vand.u32 %v1394, 4294901760
    %v1595 = vsub.f32 %v1394, %v1594
    %1596 = vmatpush.msra.mxu0 %v1595
    %v1597 = vand.u32 %v1393, 4294901760
    %v1598 = vsub.f32 %v1393, %v1597
    %1599 = vmatpush.msra.mxu0 %v1598
    %v1600 = vand.u32 %v1392, 4294901760
    %v1601 = vsub.f32 %v1392, %v1600
    %1602 = vmatpush.msra.mxu0 %v1601
    %v1603 = vand.u32 %v1390, 4294901760
    %v1604 = vsub.f32 %v1390, %v1603
    %1605 = vmatmul.f32.gmra.mxu0 %v1604
    %v1606 = vpop.f32.mrf.mxu0
    %v1607 = vadd.f32 %v1553, %v1606
    %1608 = vdwg.mxu0
    %v1609 = vand.u32 %v1407, 4294901760
    %1610 = vmatpush.msra.mxu0 %v1609
    %v1611 = vand.u32 %v1406, 4294901760
    %1612 = vmatpush.msra.mxu0 %v1611
    %v1613 = vand.u32 %v1405, 4294901760
    %1614 = vmatpush.msra.mxu0 %v1613
    %v1615 = vand.u32 %v1404, 4294901760
    %1616 = vmatpush.msra.mxu0 %v1615
    %v1617 = vand.u32 %v1403, 4294901760
    %1618 = vmatpush.msra.mxu0 %v1617
    %v1619 = vand.u32 %v1402, 4294901760
    %1620 = vmatpush.msra.mxu0 %v1619
    %v1621 = vand.u32 %v1401, 4294901760
    %1622 = vmatpush.msra.mxu0 %v1621
    %v1623 = vand.u32 %v1400, 4294901760
    %1624 = vmatpush.msra.mxu0 %v1623
    %v1625 = vand.u32 %v1399, 4294901760
    %1626 = vmatpush.msra.mxu0 %v1625
    %v1627 = vand.u32 %v1398, 4294901760
    %1628 = vmatpush.msra.mxu0 %v1627
    %v1629 = vand.u32 %v1397, 4294901760
    %1630 = vmatpush.msra.mxu0 %v1629
    %v1631 = vand.u32 %v1396, 4294901760
    %1632 = vmatpush.msra.mxu0 %v1631
    %v1633 = vand.u32 %v1395, 4294901760
    %1634 = vmatpush.msra.mxu0 %v1633
    %v1635 = vand.u32 %v1394, 4294901760
    %1636 = vmatpush.msra.mxu0 %v1635
    %v1637 = vand.u32 %v1393, 4294901760
    %1638 = vmatpush.msra.mxu0 %v1637
    %v1639 = vand.u32 %v1392, 4294901760
    %1640 = vmatpush.msra.mxu0 %v1639
    %v1641 = vand.u32 %v1390, 4294901760
    %v1642 = vsub.f32 %v1390, %v1641
    %v1643 = vand.u32 %v1642, 4294901760
    %1644 = vmatmul.f32.gmra.mxu0 %v1643
    %v1645 = vpop.f32.mrf.mxu0
    %v1646 = vadd.f32 %v1607, %v1645
    %1647 = vdwg.mxu0
    %v1648 = vand.u32 %v1407, 4294901760
    %v1649 = vsub.f32 %v1407, %v1648
    %v1650 = vand.u32 %v1649, 4294901760
    %1651 = vmatpush.msra.mxu0 %v1650
    %v1652 = vand.u32 %v1406, 4294901760
    %v1653 = vsub.f32 %v1406, %v1652
    %v1654 = vand.u32 %v1653, 4294901760
    %1655 = vmatpush.msra.mxu0 %v1654
    %v1656 = vand.u32 %v1405, 4294901760
    %v1657 = vsub.f32 %v1405, %v1656
    %v1658 = vand.u32 %v1657, 4294901760
    %1659 = vmatpush.msra.mxu0 %v1658
    %v1660 = vand.u32 %v1404, 4294901760
    %v1661 = vsub.f32 %v1404, %v1660
    %v1662 = vand.u32 %v1661, 4294901760
    %1663 = vmatpush.msra.mxu0 %v1662
    %v1664 = vand.u32 %v1403, 4294901760
    %v1665 = vsub.f32 %v1403, %v1664
    %v1666 = vand.u32 %v1665, 4294901760
    %1667 = vmatpush.msra.mxu0 %v1666
    %v1668 = vand.u32 %v1402, 4294901760
    %v1669 = vsub.f32 %v1402, %v1668
    %v1670 = vand.u32 %v1669, 4294901760
    %1671 = vmatpush.msra.mxu0 %v1670
    %v1672 = vand.u32 %v1401, 4294901760
    %v1673 = vsub.f32 %v1401, %v1672
    %v1674 = vand.u32 %v1673, 4294901760
    %1675 = vmatpush.msra.mxu0 %v1674
    %v1676 = vand.u32 %v1400, 4294901760
    %v1677 = vsub.f32 %v1400, %v1676
    %v1678 = vand.u32 %v1677, 4294901760
    %1679 = vmatpush.msra.mxu0 %v1678
    %v1680 = vand.u32 %v1399, 4294901760
    %v1681 = vsub.f32 %v1399, %v1680
    %v1682 = vand.u32 %v1681, 4294901760
    %1683 = vmatpush.msra.mxu0 %v1682
    %v1684 = vand.u32 %v1398, 4294901760
    %v1685 = vsub.f32 %v1398, %v1684
    %v1686 = vand.u32 %v1685, 4294901760
    %1687 = vmatpush.msra.mxu0 %v1686
    %v1688 = vand.u32 %v1397, 4294901760
    %v1689 = vsub.f32 %v1397, %v1688
    %v1690 = vand.u32 %v1689, 4294901760
    %1691 = vmatpush.msra.mxu0 %v1690
    %v1692 = vand.u32 %v1396, 4294901760
    %v1693 = vsub.f32 %v1396, %v1692
    %v1694 = vand.u32 %v1693, 4294901760
    %1695 = vmatpush.msra.mxu0 %v1694
    %v1696 = vand.u32 %v1395, 4294901760
    %v1697 = vsub.f32 %v1395, %v1696
    %v1698 = vand.u32 %v1697, 4294901760
    %1699 = vmatpush.msra.mxu0 %v1698
    %v1700 = vand.u32 %v1394, 4294901760
    %v1701 = vsub.f32 %v1394, %v1700
    %v1702 = vand.u32 %v1701, 4294901760
    %1703 = vmatpush.msra.mxu0 %v1702
    %v1704 = vand.u32 %v1393, 4294901760
    %v1705 = vsub.f32 %v1393, %v1704
    %v1706 = vand.u32 %v1705, 4294901760
    %1707 = vmatpush.msra.mxu0 %v1706
    %v1708 = vand.u32 %v1392, 4294901760
    %v1709 = vsub.f32 %v1392, %v1708
    %v1710 = vand.u32 %v1709, 4294901760
    %1711 = vmatpush.msra.mxu0 %v1710
    %v1712 = vand.u32 %v1390, 4294901760
    %1713 = vmatmul.f32.gmra.mxu0 %v1712
    %v1714 = vpop.f32.mrf.mxu0
    %v1715 = vadd.f32 %v1646, %v1714
    %1716 = vdwg.mxu0
    %v1717 = vand.u32 %v1407, 4294901760
    %1718 = vmatpush.msra.mxu0 %v1717
    %v1719 = vand.u32 %v1406, 4294901760
    %1720 = vmatpush.msra.mxu0 %v1719
    %v1721 = vand.u32 %v1405, 4294901760
    %1722 = vmatpush.msra.mxu0 %v1721
    %v1723 = vand.u32 %v1404, 4294901760
    %1724 = vmatpush.msra.mxu0 %v1723
    %v1725 = vand.u32 %v1403, 4294901760
    %1726 = vmatpush.msra.mxu0 %v1725
    %v1727 = vand.u32 %v1402, 4294901760
    %1728 = vmatpush.msra.mxu0 %v1727
    %v1729 = vand.u32 %v1401, 4294901760
    %1730 = vmatpush.msra.mxu0 %v1729
    %v1731 = vand.u32 %v1400, 4294901760
    %1732 = vmatpush.msra.mxu0 %v1731
    %v1733 = vand.u32 %v1399, 4294901760
    %1734 = vmatpush.msra.mxu0 %v1733
    %v1735 = vand.u32 %v1398, 4294901760
    %1736 = vmatpush.msra.mxu0 %v1735
    %v1737 = vand.u32 %v1397, 4294901760
    %1738 = vmatpush.msra.mxu0 %v1737
    %v1739 = vand.u32 %v1396, 4294901760
    %1740 = vmatpush.msra.mxu0 %v1739
    %v1741 = vand.u32 %v1395, 4294901760
    %1742 = vmatpush.msra.mxu0 %v1741
    %v1743 = vand.u32 %v1394, 4294901760
    %1744 = vmatpush.msra.mxu0 %v1743
    %v1745 = vand.u32 %v1393, 4294901760
    %1746 = vmatpush.msra.mxu0 %v1745
    %v1747 = vand.u32 %v1392, 4294901760
    %1748 = vmatpush.msra.mxu0 %v1747
    %v1749 = vand.u32 %v1390, 4294901760
    %1750 = vmatmul.f32.gmra.mxu0 %v1749
    %v1751 = vpop.f32.mrf.mxu0
    %v1752 = vadd.f32 %v1715, %v1751
    %1753 = vdwg.mxu0
    %v1754 = vtanh.pop %v1752
    %v1755 = vxor.u32 %v1752, 2147483648
    %v1756 = vmul.f32 %v1755, 1.442695
    %v1757 = vpow.pop %v1756
    %v1758 = vadd.f32 %v1757, 1.0
    %v1759 = vrcp.pop %v1758
    %v1760 = vmul.f32 %v1758, %v1759
    %v1761 = vsub.f32 1.0, %v1760
    %v1762 = vmul.f32 %v1759, %v1761
    %v1763 = vadd.f32 %v1759, %v1762
    %vm1764 = vweird.f32 %v1758
    %vm1765 = vweird.f32 %v1759
    %vm1766 = vmor %vm1764, %vm1765
    %v1767 = vsel %vm1766, %v1759, %v1763
    %v1768 = vand.u32 2147483647, %v1758
    %vm1769 = vcmp.eq.f32.partialorder %v1768, 8.507059e+37
    %v1770 = vand.u32 %v1758, 2147483648
    %v1771 = vor.u32 1.1754944e-38, %v1770
    %v1772 = vsel %vm1769, %v1771, %v1767
    %v1773 = vmul.f32 1.0, %v1772
    %v1774 = vsel %vm119, %v1754, %v1773
    %s1775 = scalar_lea.vmem [#allocation7], 24
    %v1776 = vld [vmem:[%s1775] sm:$0xff]
    %1778 = vrot.lane.b32.xlu0 %v1776, 32
    %v1779 = vpop.permute.xlu0 %1778
    %v1781 = vmul.f32 %v1774, %v1779
    %1783 = vrot.lane.b32.xlu0 %v1774, 64
    %v1784 = vpop.permute.xlu0 %1783
    %v1786 = vmul.f32 %v1774, %v1784
    %1788 = vrot.lane.b32.xlu0 %v1786, 32
    %v1789 = vpop.permute.xlu0 %1788
    %v1791 = vadd.f32 %v1781, %v1789
    %v1792 = vtanh.pop %v1791
    %1794 = vrot.lane.b32.xlu0 %v1792, 64
    %v1795 = vpop.permute.xlu0 %1794
    %v1797 = vmul.f32 %v1774, %v1795
    %1798 = vrot.lane.b32.xlu0 %v959, 64
    %v1799 = vpop.permute.xlu0 %1798
    %1801 = vrot.lane.b32.xlu0 %v1378, 96
    %v1802 = vpop.permute.xlu0 %1801
    %v1804 = vsel %vm131, %v545, %v1799
    %v1805 = vsel %vm133, %v1804, %v1802
    %v1806 = vsel %vm135, %v1805, %v1797
    %1807 = vst [vmem:[%s6] sm:$0xff] %v1806
    %1809 = vrot.lane.b32.xlu0 %v534, 96
    %v1810 = vpop.permute.xlu0 %1809
    %1813 = vrot.lane.b32.xlu0 %v1372, 32
    %v1814 = vpop.permute.xlu0 %1813
    %1817 = vrot.lane.b32.xlu0 %v1791, 64
    %v1818 = vpop.permute.xlu0 %1817
    %v1820 = vsel %vm131, %v1810, %v953
    %v1821 = vsel %vm133, %v1820, %v1814
    %v1822 = vsel %vm135, %v1821, %v1818
    %1823 = vst [vmem:[%s7] sm:$0xff] %v1822
    // Predicated region
    $region50: #{decoder_forward.1} parent=1 // pred_check
      _
    $region51: #{decoder_forward.1} parent=1 // pred_check_branch
      %1825 = sbr.rel (0) target = $region53
    $region52: #{decoder_forward.1} parent=1 // pred_region
      _
    $region53: #{decoder_forward.1} parent=1 // pred_fallthru
      _
    // Predicated region
    $region54: #{decoder_forward.1} parent=1 // pred_check
      _
    $region55: #{decoder_forward.1} parent=1 // pred_check_branch
      %1827 = sbr.rel (0) target = $region57
    $region56: #{decoder_forward.1} parent=1 // pred_region
      _
    $region57: #{decoder_forward.1} parent=1 // pred_fallthru
      _
    // Predicated region
    $region58: #{decoder_forward.1} parent=1 // pred_check
      _
    $region59: #{decoder_forward.1} parent=1 // pred_check_branch
      %1829 = sbr.rel (0) target = $region61
    $region60: #{decoder_forward.1} parent=1 // pred_region
      _
    $region61: #{decoder_forward.1} parent=1 // pred_fallthru
      _
    // Predicated region
    $region62: #{decoder_forward.1} parent=1 // pred_check
      _
    $region63: #{decoder_forward.1} parent=1 // pred_check_branch
      %1831 = sbr.rel (0) target = $region65
    $region64: #{decoder_forward.1} parent=1 // pred_region
      _
    $region65: #{decoder_forward.1} parent=1 // pred_fallthru
      _
    %1832 = vsyncpa [#allocation3], 1
    %1833 = vsyncpa [#allocation5], 1
    %1834 = vsyncpa [#allocation8], 1
    %1835 = vsyncpa [#allocation11], 1

</llo_original>
